<compile_context>
chip_gen: v7x
topology: tpu7x:2x2x1
jax: 0.10.0
libtpu: 0.0.40
codegen_flags: <defaults>
</compile_context>

<pallas_src>
import functools

import jax
import jax.numpy as jnp
from jax.experimental import pallas as pl
from jax.experimental.pallas import tpu as pltpu

BN_EPS = 1e-5


def _recurrent_block_kernel(x_ref, w_ref, bias_ref, gamma_ref, beta_ref,
                            avg_ref, o_ref, buf_ref, *, dims, t):
    """Whole Recurrent_block forward fused into one kernel.

    x_ref     : (N*H, W*C)   input activations, lane-dense (channel fastest)
    w_ref     : (3, W*C, W*C) per-dy banded conv weights (dx + ci folded in)
    bias_ref  : (1, W*C)      conv bias tiled over W
    gamma_ref : (1, W*C)      BN weight tiled over W
    beta_ref  : (1, W*C)      BN bias tiled over W
    avg_ref   : (W*C, W*C)    channel-averaging matrix (mean over W, broadcast)
    o_ref     : (N*H, W*C)    output
    buf_ref   : (N, H+2, W*C) VMEM scratch, vertical zero padding rows
    """
    N, H, W, C = dims
    WC = W * C
    rows = N * H
    inv_nh = 1.0 / float(N * H)

    # Zero once: rows 0 and H+1 of each image stay zero (vertical conv pad).
    buf_ref[...] = jnp.zeros_like(buf_ref)

    x = x_ref[...]
    bias = bias_ref[...]
    gamma = gamma_ref[...]
    beta = beta_ref[...]
    avg = avg_ref[...]

    def conv_bn_relu():
        # 3x3 conv = 3 banded matmuls: dy via a sublane-shifted read of the
        # padded buffer, dx and the channel contraction live in w_ref[dy].
        acc = jnp.zeros((rows, WC), jnp.float32)
        for dy in range(3):
            patch = buf_ref[:, dy:dy + H, :].reshape(rows, WC)
            acc = acc + jnp.dot(patch, w_ref[dy],
                                preferred_element_type=jnp.float32)
        y = acc + bias

        # BatchNorm2d, training-mode batch statistics over N*H*W per channel
        # (biased variance, eps=1e-5), computed in the lane-dense layout.
        mean = jnp.dot(jnp.sum(y, axis=0, keepdims=True) * inv_nh, avg,
                       preferred_element_type=jnp.float32)          # (1, W*C)
        cen = y - mean
        var = jnp.dot(jnp.sum(cen * cen, axis=0, keepdims=True) * inv_nh, avg,
                      preferred_element_type=jnp.float32)           # (1, W*C)
        scale = gamma * jax.lax.rsqrt(var + BN_EPS)
        return jnp.maximum(cen * scale + beta, 0.0)

    # i == 0 first half: x1 = conv(x)   (no zero-prev add)
    buf_ref[:, 1:1 + H, :] = x.reshape(N, H, WC)
    x1 = conv_bn_relu()

    # every iteration i = 0..t-1: x1 = conv(x + x1)
    for _ in range(t):
        buf_ref[:, 1:1 + H, :] = (x + x1).reshape(N, H, WC)
        x1 = conv_bn_relu()

    o_ref[...] = x1.astype(o_ref.dtype)


def _make_band_weights(w_hwio, W):
    """Fold dx taps + channel contraction into per-dy (W*C, W*C) band matrices.

    band[dy][xin*C + ci, xo*C + co] = w[dy, dx, ci, co] with xin = xo + dx - 1;
    out-of-range xin (the horizontal zero padding) is simply absent.
    """
    C = w_hwio.shape[2]
    mats = []
    for dy in range(3):
        m = jnp.zeros((W * C, W * C), jnp.float32)
        for dx in range(3):
            shift = jnp.eye(W, k=1 - dx, dtype=jnp.float32)  # ones at (xo+dx-1, xo)
            m = m + jnp.kron(shift, w_hwio[dy, dx].astype(jnp.float32))
        mats.append(m)
    return jnp.stack(mats)                                    # (3, W*C, W*C)


def recurrent_block(x_nchw, w_hwio, b, gamma, beta, t=2):
    """Pallas implementation of Recurrent_block.forward (NCHW in / NCHW out)."""
    N, C, H, W = x_nchw.shape
    Hp = H + 2
    WC = W * C

    # Lane-dense activation layout: row = n*H + y, lane = x*C + c.
    x2d = jnp.transpose(x_nchw, (0, 2, 3, 1)).astype(jnp.float32).reshape(N * H, WC)

    wband = _make_band_weights(w_hwio, W)
    bias_wc = jnp.tile(b.astype(jnp.float32).reshape(1, C), (1, W))
    gamma_wc = jnp.tile(gamma.astype(jnp.float32).reshape(1, C), (1, W))
    beta_wc = jnp.tile(beta.astype(jnp.float32).reshape(1, C), (1, W))
    # Channel-averaging matrix: per-channel mean over the W x-positions,
    # broadcast back to every (x, c) lane.
    avg = jnp.kron(jnp.full((W, W), 1.0 / W, jnp.float32),
                   jnp.eye(C, dtype=jnp.float32))             # (W*C, W*C)

    kernel = functools.partial(_recurrent_block_kernel, dims=(N, H, W, C), t=t)
    spec2 = lambda shp: pl.BlockSpec(shp, lambda i: (0, 0))

    out2d = pl.pallas_call(
        kernel,
        out_shape=jax.ShapeDtypeStruct((N * H, WC), jnp.float32),
        grid=(1,),
        in_specs=[
            spec2((N * H, WC)),                               # x
            pl.BlockSpec((3, WC, WC), lambda i: (0, 0, 0)),   # banded weights
            spec2((1, WC)),                                   # conv bias (tiled)
            spec2((1, WC)),                                   # BN gamma (tiled)
            spec2((1, WC)),                                   # BN beta (tiled)
            spec2((WC, WC)),                                  # channel-avg matrix
        ],
        out_specs=spec2((N * H, WC)),
        scratch_shapes=[pltpu.VMEM((N, Hp, WC), jnp.float32)],
        compiler_params=pltpu.CompilerParams(
            dimension_semantics=("arbitrary",),
            vmem_limit_bytes=32 * 1024 * 1024),
    )(x2d, wband, bias_wc, gamma_wc, beta_wc, avg)

    return jnp.transpose(out2d.reshape(N, H, W, C), (0, 3, 1, 2))


def recurrent_block_reference(x_nchw, w_hwio, b, gamma, beta, t=2):
    """Pure-JAX reference (same semantics) for verification."""
    x = jnp.transpose(x_nchw, (0, 2, 3, 1)).astype(jnp.float32)

    def cbr(a):
        y = jax.lax.conv_general_dilated(
            a, w_hwio.astype(jnp.float32), window_strides=(1, 1), padding="SAME",
            dimension_numbers=("NHWC", "HWIO", "NHWC"))
        y = y + b.reshape(1, 1, 1, -1)
        mean = jnp.mean(y, axis=(0, 1, 2), keepdims=True)
        var = jnp.mean((y - mean) ** 2, axis=(0, 1, 2), keepdims=True)
        y = (y - mean) * jax.lax.rsqrt(var + BN_EPS)
        y = y * gamma.reshape(1, 1, 1, -1) + beta.reshape(1, 1, 1, -1)
        return jnp.maximum(y, 0.0)

    x1 = None
    for i in range(t):
        if i == 0:
            x1 = cbr(x)
        x1 = cbr(x + x1)
    return jnp.transpose(x1, (0, 3, 1, 2))


if __name__ == "__main__":
    N, C, H, W, T = 2, 4, 16, 16, 2
    key = jax.random.PRNGKey(0)
    kx, kw, kb, kg, kbe = jax.random.split(key, 5)

    # Deterministic parameter init (shapes from Recurrent_block.__init__).
    x = jax.random.normal(kx, (N, C, H, W), jnp.float32)
    w = jax.random.normal(kw, (3, 3, C, C), jnp.float32) * 0.2   # HWIO conv weight
    b = jax.random.normal(kb, (C,), jnp.float32) * 0.1           # conv bias
    gamma = 1.0 + 0.1 * jax.random.normal(kg, (C,), jnp.float32) # BN weight
    beta = 0.1 * jax.random.normal(kbe, (C,), jnp.float32)       # BN bias

    out = jax.block_until_ready(recurrent_block(x, w, b, gamma, beta, t=T))
    ref = jax.block_until_ready(
        recurrent_block_reference(x, w, b, gamma, beta, t=T))

    assert out.shape == (N, C, H, W)
    err = float(jnp.max(jnp.abs(out - ref)))
    assert err < 2e-3, f"max abs error too large: {err}"
    print("KERNEL_OK")
</pallas_src>

<mosaic_0001>
module attributes {stable_mosaic.version = 11 : i64} {
  func.func @_recurrent_block_kernel(%arg0: i32, %arg1: memref<32x64xf32, #tpu.memory_space<vmem>>, %arg2: memref<3x64x64xf32, #tpu.memory_space<vmem>>, %arg3: memref<1x64xf32, #tpu.memory_space<vmem>>, %arg4: memref<1x64xf32, #tpu.memory_space<vmem>>, %arg5: memref<1x64xf32, #tpu.memory_space<vmem>>, %arg6: memref<64x64xf32, #tpu.memory_space<vmem>>, %arg7: memref<32x64xf32, #tpu.memory_space<vmem>>, %arg8: memref<2x18x64xf32, #tpu.memory_space<vmem>>) attributes {dimension_semantics = [#tpu.dimension_semantics<arbitrary>], iteration_bounds = array<i64: 1>, scalar_prefetch = 0 : i64, scratch_operands = 1 : i64, tpu.core_type = #tpu.core_type<tc>, window_params = [{pipeline_mode = #tpu.pipeline_mode<synchronous>, transform_indices = @transform_0, window_bounds = array<i64: 32, 64>}, {pipeline_mode = #tpu.pipeline_mode<synchronous>, transform_indices = @transform_1, window_bounds = array<i64: 3, 64, 64>}, {pipeline_mode = #tpu.pipeline_mode<synchronous>, transform_indices = @transform_2, window_bounds = array<i64: 1, 64>}, {pipeline_mode = #tpu.pipeline_mode<synchronous>, transform_indices = @transform_3, window_bounds = array<i64: 1, 64>}, {pipeline_mode = #tpu.pipeline_mode<synchronous>, transform_indices = @transform_4, window_bounds = array<i64: 1, 64>}, {pipeline_mode = #tpu.pipeline_mode<synchronous>, transform_indices = @transform_5, window_bounds = array<i64: 64, 64>}, {pipeline_mode = #tpu.pipeline_mode<synchronous>, transform_indices = @transform_6, window_bounds = array<i64: 32, 64>}]} {
    %cst = arith.constant 0.000000e+00 : f32
    %0 = vector.broadcast %cst : f32 to vector<2x18x64xf32>
    %c0 = arith.constant 0 : index
    %c0_0 = arith.constant 0 : index
    %c0_1 = arith.constant 0 : index
    %1 = vector.load %arg8[%c0, %c0_0, %c0_1] : memref<2x18x64xf32, #tpu.memory_space<vmem>>, vector<2x18x64xf32>
    tpu.vector_store %arg8[%c0, %c0_0, %c0_1], %0 {strides = array<i32>} : memref<2x18x64xf32, #tpu.memory_space<vmem>>, vector<2x18x64xf32>,
    %c0_2 = arith.constant 0 : index
    %c0_3 = arith.constant 0 : index
    %2 = vector.load %arg1[%c0_2, %c0_3] : memref<32x64xf32, #tpu.memory_space<vmem>>, vector<32x64xf32>
    %c0_4 = arith.constant 0 : index
    %c0_5 = arith.constant 0 : index
    %3 = vector.load %arg3[%c0_4, %c0_5] : memref<1x64xf32, #tpu.memory_space<vmem>>, vector<1x64xf32>
    %c0_6 = arith.constant 0 : index
    %c0_7 = arith.constant 0 : index
    %4 = vector.load %arg4[%c0_6, %c0_7] : memref<1x64xf32, #tpu.memory_space<vmem>>, vector<1x64xf32>
    %c0_8 = arith.constant 0 : index
    %c0_9 = arith.constant 0 : index
    %5 = vector.load %arg5[%c0_8, %c0_9] : memref<1x64xf32, #tpu.memory_space<vmem>>, vector<1x64xf32>
    %c0_10 = arith.constant 0 : index
    %c0_11 = arith.constant 0 : index
    %6 = vector.load %arg6[%c0_10, %c0_11] : memref<64x64xf32, #tpu.memory_space<vmem>>, vector<64x64xf32>
    %7 = vector.shape_cast %2 : vector<32x64xf32> to vector<2x16x64xf32>
    %c0_12 = arith.constant 0 : index
    %c1 = arith.constant 1 : index
    %c0_13 = arith.constant 0 : index
    %8 = vector.load %arg8[%c0_12, %c1, %c0_13] : memref<2x18x64xf32, #tpu.memory_space<vmem>>, vector<2x16x64xf32>
    tpu.vector_store %arg8[%c0_12, %c1, %c0_13], %7 {strides = array<i32>} : memref<2x18x64xf32, #tpu.memory_space<vmem>>, vector<2x16x64xf32>,
    %cst_14 = arith.constant 0.000000e+00 : f32
    %9 = vector.broadcast %cst_14 : f32 to vector<32x64xf32>
    %c0_15 = arith.constant 0 : index
    %c0_16 = arith.constant 0 : index
    %c0_17 = arith.constant 0 : index
    %10 = vector.load %arg8[%c0_15, %c0_16, %c0_17] : memref<2x18x64xf32, #tpu.memory_space<vmem>>, vector<2x16x64xf32>
    %11 = vector.shape_cast %10 : vector<2x16x64xf32> to vector<32x64xf32>
    %c0_18 = arith.constant 0 : index
    %c0_19 = arith.constant 0 : index
    %c0_20 = arith.constant 0 : index
    %12 = vector.load %arg2[%c0_18, %c0_19, %c0_20] : memref<3x64x64xf32, #tpu.memory_space<vmem>>, vector<1x64x64xf32>
    %13 = vector.shape_cast %12 : vector<1x64x64xf32> to vector<64x64xf32>
    %cst_21 = arith.constant dense<0.000000e+00> : vector<32x64xf32>
    %14 = tpu.matmul %11, %13, %cst_21 {dimension_numbers = #tpu.dot_dimension_numbers<[1], [0], [0], [1], [0, 0, 1, 1], [], []>} : vector<32x64xf32>, vector<64x64xf32>, vector<32x64xf32> -> vector<32x64xf32>
    %15 = arith.addf %9, %14 : vector<32x64xf32>
    %c0_22 = arith.constant 0 : index
    %c1_23 = arith.constant 1 : index
    %c0_24 = arith.constant 0 : index
    %16 = vector.load %arg8[%c0_22, %c1_23, %c0_24] : memref<2x18x64xf32, #tpu.memory_space<vmem>>, vector<2x16x64xf32>
    %17 = vector.shape_cast %16 : vector<2x16x64xf32> to vector<32x64xf32>
    %c1_25 = arith.constant 1 : index
    %c0_26 = arith.constant 0 : index
    %c0_27 = arith.constant 0 : index
    %18 = vector.load %arg2[%c1_25, %c0_26, %c0_27] : memref<3x64x64xf32, #tpu.memory_space<vmem>>, vector<1x64x64xf32>
    %19 = vector.shape_cast %18 : vector<1x64x64xf32> to vector<64x64xf32>
    %cst_28 = arith.constant dense<0.000000e+00> : vector<32x64xf32>
    %20 = tpu.matmul %17, %19, %cst_28 {dimension_numbers = #tpu.dot_dimension_numbers<[1], [0], [0], [1], [0, 0, 1, 1], [], []>} : vector<32x64xf32>, vector<64x64xf32>, vector<32x64xf32> -> vector<32x64xf32>
    %21 = arith.addf %15, %20 : vector<32x64xf32>
    %c0_29 = arith.constant 0 : index
    %c2 = arith.constant 2 : index
    %c0_30 = arith.constant 0 : index
    %22 = vector.load %arg8[%c0_29, %c2, %c0_30] : memref<2x18x64xf32, #tpu.memory_space<vmem>>, vector<2x16x64xf32>
    %23 = vector.shape_cast %22 : vector<2x16x64xf32> to vector<32x64xf32>
    %c2_31 = arith.constant 2 : index
    %c0_32 = arith.constant 0 : index
    %c0_33 = arith.constant 0 : index
    %24 = vector.load %arg2[%c2_31, %c0_32, %c0_33] : memref<3x64x64xf32, #tpu.memory_space<vmem>>, vector<1x64x64xf32>
    %25 = vector.shape_cast %24 : vector<1x64x64xf32> to vector<64x64xf32>
    %cst_34 = arith.constant dense<0.000000e+00> : vector<32x64xf32>
    %26 = tpu.matmul %23, %25, %cst_34 {dimension_numbers = #tpu.dot_dimension_numbers<[1], [0], [0], [1], [0, 0, 1, 1], [], []>} : vector<32x64xf32>, vector<64x64xf32>, vector<32x64xf32> -> vector<32x64xf32>
    %27 = arith.addf %21, %26 : vector<32x64xf32>
    %28 = vector.broadcast %3 : vector<1x64xf32> to vector<32x64xf32>
    %29 = arith.addf %27, %28 : vector<32x64xf32>
    %cst_35 = arith.constant dense<0.000000e+00> : vector<64xf32>
    %30 = vector.multi_reduction <add>, %29, %cst_35 [0] : vector<32x64xf32> to vector<64xf32>
    %31 = vector.shape_cast %30 : vector<64xf32> to vector<1x64xf32>
    %cst_36 = arith.constant 3.125000e-02 : f32
    %32 = vector.broadcast %cst_36 : f32 to vector<1x64xf32>
    %33 = arith.mulf %31, %32 : vector<1x64xf32>
    %cst_37 = arith.constant dense<0.000000e+00> : vector<1x64xf32>
    %34 = tpu.matmul %33, %6, %cst_37 {dimension_numbers = #tpu.dot_dimension_numbers<[1], [0], [0], [1], [0, 0, 1, 1], [], []>} : vector<1x64xf32>, vector<64x64xf32>, vector<1x64xf32> -> vector<1x64xf32>
    %35 = vector.broadcast %34 : vector<1x64xf32> to vector<32x64xf32>
    %36 = arith.subf %29, %35 : vector<32x64xf32>
    %37 = arith.mulf %36, %36 : vector<32x64xf32>
    %cst_38 = arith.constant dense<0.000000e+00> : vector<64xf32>
    %38 = vector.multi_reduction <add>, %37, %cst_38 [0] : vector<32x64xf32> to vector<64xf32>
    %39 = vector.shape_cast %38 : vector<64xf32> to vector<1x64xf32>
    %cst_39 = arith.constant 3.125000e-02 : f32
    %40 = vector.broadcast %cst_39 : f32 to vector<1x64xf32>
    %41 = arith.mulf %39, %40 : vector<1x64xf32>
    %cst_40 = arith.constant dense<0.000000e+00> : vector<1x64xf32>
    %42 = tpu.matmul %41, %6, %cst_40 {dimension_numbers = #tpu.dot_dimension_numbers<[1], [0], [0], [1], [0, 0, 1, 1], [], []>} : vector<1x64xf32>, vector<64x64xf32>, vector<1x64xf32> -> vector<1x64xf32>
    %cst_41 = arith.constant 9.99999974E-6 : f32
    %43 = vector.broadcast %cst_41 : f32 to vector<1x64xf32>
    %44 = arith.addf %42, %43 : vector<1x64xf32>
    %45 = math.rsqrt %44 : vector<1x64xf32>
    %46 = arith.mulf %4, %45 : vector<1x64xf32>
    %47 = vector.broadcast %46 : vector<1x64xf32> to vector<32x64xf32>
    %48 = arith.mulf %36, %47 : vector<32x64xf32>
    %49 = vector.broadcast %5 : vector<1x64xf32> to vector<32x64xf32>
    %50 = arith.addf %48, %49 : vector<32x64xf32>
    %cst_42 = arith.constant 0.000000e+00 : f32
    %51 = vector.broadcast %cst_42 : f32 to vector<32x64xf32>
    %52 = arith.maximumf %50, %51 : vector<32x64xf32>
    %53 = arith.addf %2, %52 : vector<32x64xf32>
    %54 = vector.shape_cast %53 : vector<32x64xf32> to vector<2x16x64xf32>
    %c0_43 = arith.constant 0 : index
    %c1_44 = arith.constant 1 : index
    %c0_45 = arith.constant 0 : index
    %55 = vector.load %arg8[%c0_43, %c1_44, %c0_45] : memref<2x18x64xf32, #tpu.memory_space<vmem>>, vector<2x16x64xf32>
    tpu.vector_store %arg8[%c0_43, %c1_44, %c0_45], %54 {strides = array<i32>} : memref<2x18x64xf32, #tpu.memory_space<vmem>>, vector<2x16x64xf32>,
    %cst_46 = arith.constant 0.000000e+00 : f32
    %56 = vector.broadcast %cst_46 : f32 to vector<32x64xf32>
    %c0_47 = arith.constant 0 : index
    %c0_48 = arith.constant 0 : index
    %c0_49 = arith.constant 0 : index
    %57 = vector.load %arg8[%c0_47, %c0_48, %c0_49] : memref<2x18x64xf32, #tpu.memory_space<vmem>>, vector<2x16x64xf32>
    %58 = vector.shape_cast %57 : vector<2x16x64xf32> to vector<32x64xf32>
    %c0_50 = arith.constant 0 : index
    %c0_51 = arith.constant 0 : index
    %c0_52 = arith.constant 0 : index
    %59 = vector.load %arg2[%c0_50, %c0_51, %c0_52] : memref<3x64x64xf32, #tpu.memory_space<vmem>>, vector<1x64x64xf32>
    %60 = vector.shape_cast %59 : vector<1x64x64xf32> to vector<64x64xf32>
    %cst_53 = arith.constant dense<0.000000e+00> : vector<32x64xf32>
    %61 = tpu.matmul %58, %60, %cst_53 {dimension_numbers = #tpu.dot_dimension_numbers<[1], [0], [0], [1], [0, 0, 1, 1], [], []>} : vector<32x64xf32>, vector<64x64xf32>, vector<32x64xf32> -> vector<32x64xf32>
    %62 = arith.addf %56, %61 : vector<32x64xf32>
    %c0_54 = arith.constant 0 : index
    %c1_55 = arith.constant 1 : index
    %c0_56 = arith.constant 0 : index
    %63 = vector.load %arg8[%c0_54, %c1_55, %c0_56] : memref<2x18x64xf32, #tpu.memory_space<vmem>>, vector<2x16x64xf32>
    %64 = vector.shape_cast %63 : vector<2x16x64xf32> to vector<32x64xf32>
    %c1_57 = arith.constant 1 : index
    %c0_58 = arith.constant 0 : index
    %c0_59 = arith.constant 0 : index
    %65 = vector.load %arg2[%c1_57, %c0_58, %c0_59] : memref<3x64x64xf32, #tpu.memory_space<vmem>>, vector<1x64x64xf32>
    %66 = vector.shape_cast %65 : vector<1x64x64xf32> to vector<64x64xf32>
    %cst_60 = arith.constant dense<0.000000e+00> : vector<32x64xf32>
    %67 = tpu.matmul %64, %66, %cst_60 {dimension_numbers = #tpu.dot_dimension_numbers<[1], [0], [0], [1], [0, 0, 1, 1], [], []>} : vector<32x64xf32>, vector<64x64xf32>, vector<32x64xf32> -> vector<32x64xf32>
    %68 = arith.addf %62, %67 : vector<32x64xf32>
    %c0_61 = arith.constant 0 : index
    %c2_62 = arith.constant 2 : index
    %c0_63 = arith.constant 0 : index
    %69 = vector.load %arg8[%c0_61, %c2_62, %c0_63] : memref<2x18x64xf32, #tpu.memory_space<vmem>>, vector<2x16x64xf32>
    %70 = vector.shape_cast %69 : vector<2x16x64xf32> to vector<32x64xf32>
    %c2_64 = arith.constant 2 : index
    %c0_65 = arith.constant 0 : index
    %c0_66 = arith.constant 0 : index
    %71 = vector.load %arg2[%c2_64, %c0_65, %c0_66] : memref<3x64x64xf32, #tpu.memory_space<vmem>>, vector<1x64x64xf32>
    %72 = vector.shape_cast %71 : vector<1x64x64xf32> to vector<64x64xf32>
    %cst_67 = arith.constant dense<0.000000e+00> : vector<32x64xf32>
    %73 = tpu.matmul %70, %72, %cst_67 {dimension_numbers = #tpu.dot_dimension_numbers<[1], [0], [0], [1], [0, 0, 1, 1], [], []>} : vector<32x64xf32>, vector<64x64xf32>, vector<32x64xf32> -> vector<32x64xf32>
    %74 = arith.addf %68, %73 : vector<32x64xf32>
    %75 = vector.broadcast %3 : vector<1x64xf32> to vector<32x64xf32>
    %76 = arith.addf %74, %75 : vector<32x64xf32>
    %cst_68 = arith.constant dense<0.000000e+00> : vector<64xf32>
    %77 = vector.multi_reduction <add>, %76, %cst_68 [0] : vector<32x64xf32> to vector<64xf32>
    %78 = vector.shape_cast %77 : vector<64xf32> to vector<1x64xf32>
    %cst_69 = arith.constant 3.125000e-02 : f32
    %79 = vector.broadcast %cst_69 : f32 to vector<1x64xf32>
    %80 = arith.mulf %78, %79 : vector<1x64xf32>
    %cst_70 = arith.constant dense<0.000000e+00> : vector<1x64xf32>
    %81 = tpu.matmul %80, %6, %cst_70 {dimension_numbers = #tpu.dot_dimension_numbers<[1], [0], [0], [1], [0, 0, 1, 1], [], []>} : vector<1x64xf32>, vector<64x64xf32>, vector<1x64xf32> -> vector<1x64xf32>
    %82 = vector.broadcast %81 : vector<1x64xf32> to vector<32x64xf32>
    %83 = arith.subf %76, %82 : vector<32x64xf32>
    %84 = arith.mulf %83, %83 : vector<32x64xf32>
    %cst_71 = arith.constant dense<0.000000e+00> : vector<64xf32>
    %85 = vector.multi_reduction <add>, %84, %cst_71 [0] : vector<32x64xf32> to vector<64xf32>
    %86 = vector.shape_cast %85 : vector<64xf32> to vector<1x64xf32>
    %cst_72 = arith.constant 3.125000e-02 : f32
    %87 = vector.broadcast %cst_72 : f32 to vector<1x64xf32>
    %88 = arith.mulf %86, %87 : vector<1x64xf32>
    %cst_73 = arith.constant dense<0.000000e+00> : vector<1x64xf32>
    %89 = tpu.matmul %88, %6, %cst_73 {dimension_numbers = #tpu.dot_dimension_numbers<[1], [0], [0], [1], [0, 0, 1, 1], [], []>} : vector<1x64xf32>, vector<64x64xf32>, vector<1x64xf32> -> vector<1x64xf32>
    %cst_74 = arith.constant 9.99999974E-6 : f32
    %90 = vector.broadcast %cst_74 : f32 to vector<1x64xf32>
    %91 = arith.addf %89, %90 : vector<1x64xf32>
    %92 = math.rsqrt %91 : vector<1x64xf32>
    %93 = arith.mulf %4, %92 : vector<1x64xf32>
    %94 = vector.broadcast %93 : vector<1x64xf32> to vector<32x64xf32>
    %95 = arith.mulf %83, %94 : vector<32x64xf32>
    %96 = vector.broadcast %5 : vector<1x64xf32> to vector<32x64xf32>
    %97 = arith.addf %95, %96 : vector<32x64xf32>
    %cst_75 = arith.constant 0.000000e+00 : f32
    %98 = vector.broadcast %cst_75 : f32 to vector<32x64xf32>
    %99 = arith.maximumf %97, %98 : vector<32x64xf32>
    %100 = arith.addf %2, %99 : vector<32x64xf32>
    %101 = vector.shape_cast %100 : vector<32x64xf32> to vector<2x16x64xf32>
    %c0_76 = arith.constant 0 : index
    %c1_77 = arith.constant 1 : index
    %c0_78 = arith.constant 0 : index
    %102 = vector.load %arg8[%c0_76, %c1_77, %c0_78] : memref<2x18x64xf32, #tpu.memory_space<vmem>>, vector<2x16x64xf32>
    tpu.vector_store %arg8[%c0_76, %c1_77, %c0_78], %101 {strides = array<i32>} : memref<2x18x64xf32, #tpu.memory_space<vmem>>, vector<2x16x64xf32>,
    %cst_79 = arith.constant 0.000000e+00 : f32
    %103 = vector.broadcast %cst_79 : f32 to vector<32x64xf32>
    %c0_80 = arith.constant 0 : index
    %c0_81 = arith.constant 0 : index
    %c0_82 = arith.constant 0 : index
    %104 = vector.load %arg8[%c0_80, %c0_81, %c0_82] : memref<2x18x64xf32, #tpu.memory_space<vmem>>, vector<2x16x64xf32>
    %105 = vector.shape_cast %104 : vector<2x16x64xf32> to vector<32x64xf32>
    %c0_83 = arith.constant 0 : index
    %c0_84 = arith.constant 0 : index
    %c0_85 = arith.constant 0 : index
    %106 = vector.load %arg2[%c0_83, %c0_84, %c0_85] : memref<3x64x64xf32, #tpu.memory_space<vmem>>, vector<1x64x64xf32>
    %107 = vector.shape_cast %106 : vector<1x64x64xf32> to vector<64x64xf32>
    %cst_86 = arith.constant dense<0.000000e+00> : vector<32x64xf32>
    %108 = tpu.matmul %105, %107, %cst_86 {dimension_numbers = #tpu.dot_dimension_numbers<[1], [0], [0], [1], [0, 0, 1, 1], [], []>} : vector<32x64xf32>, vector<64x64xf32>, vector<32x64xf32> -> vector<32x64xf32>
    %109 = arith.addf %103, %108 : vector<32x64xf32>
    %c0_87 = arith.constant 0 : index
    %c1_88 = arith.constant 1 : index
    %c0_89 = arith.constant 0 : index
    %110 = vector.load %arg8[%c0_87, %c1_88, %c0_89] : memref<2x18x64xf32, #tpu.memory_space<vmem>>, vector<2x16x64xf32>
    %111 = vector.shape_cast %110 : vector<2x16x64xf32> to vector<32x64xf32>
    %c1_90 = arith.constant 1 : index
    %c0_91 = arith.constant 0 : index
    %c0_92 = arith.constant 0 : index
    %112 = vector.load %arg2[%c1_90, %c0_91, %c0_92] : memref<3x64x64xf32, #tpu.memory_space<vmem>>, vector<1x64x64xf32>
    %113 = vector.shape_cast %112 : vector<1x64x64xf32> to vector<64x64xf32>
    %cst_93 = arith.constant dense<0.000000e+00> : vector<32x64xf32>
    %114 = tpu.matmul %111, %113, %cst_93 {dimension_numbers = #tpu.dot_dimension_numbers<[1], [0], [0], [1], [0, 0, 1, 1], [], []>} : vector<32x64xf32>, vector<64x64xf32>, vector<32x64xf32> -> vector<32x64xf32>
    %115 = arith.addf %109, %114 : vector<32x64xf32>
    %c0_94 = arith.constant 0 : index
    %c2_95 = arith.constant 2 : index
    %c0_96 = arith.constant 0 : index
    %116 = vector.load %arg8[%c0_94, %c2_95, %c0_96] : memref<2x18x64xf32, #tpu.memory_space<vmem>>, vector<2x16x64xf32>
    %117 = vector.shape_cast %116 : vector<2x16x64xf32> to vector<32x64xf32>
    %c2_97 = arith.constant 2 : index
    %c0_98 = arith.constant 0 : index
    %c0_99 = arith.constant 0 : index
    %118 = vector.load %arg2[%c2_97, %c0_98, %c0_99] : memref<3x64x64xf32, #tpu.memory_space<vmem>>, vector<1x64x64xf32>
    %119 = vector.shape_cast %118 : vector<1x64x64xf32> to vector<64x64xf32>
    %cst_100 = arith.constant dense<0.000000e+00> : vector<32x64xf32>
    %120 = tpu.matmul %117, %119, %cst_100 {dimension_numbers = #tpu.dot_dimension_numbers<[1], [0], [0], [1], [0, 0, 1, 1], [], []>} : vector<32x64xf32>, vector<64x64xf32>, vector<32x64xf32> -> vector<32x64xf32>
    %121 = arith.addf %115, %120 : vector<32x64xf32>
    %122 = vector.broadcast %3 : vector<1x64xf32> to vector<32x64xf32>
    %123 = arith.addf %121, %122 : vector<32x64xf32>
    %cst_101 = arith.constant dense<0.000000e+00> : vector<64xf32>
    %124 = vector.multi_reduction <add>, %123, %cst_101 [0] : vector<32x64xf32> to vector<64xf32>
    %125 = vector.shape_cast %124 : vector<64xf32> to vector<1x64xf32>
    %cst_102 = arith.constant 3.125000e-02 : f32
    %126 = vector.broadcast %cst_102 : f32 to vector<1x64xf32>
    %127 = arith.mulf %125, %126 : vector<1x64xf32>
    %cst_103 = arith.constant dense<0.000000e+00> : vector<1x64xf32>
    %128 = tpu.matmul %127, %6, %cst_103 {dimension_numbers = #tpu.dot_dimension_numbers<[1], [0], [0], [1], [0, 0, 1, 1], [], []>} : vector<1x64xf32>, vector<64x64xf32>, vector<1x64xf32> -> vector<1x64xf32>
    %129 = vector.broadcast %128 : vector<1x64xf32> to vector<32x64xf32>
    %130 = arith.subf %123, %129 : vector<32x64xf32>
    %131 = arith.mulf %130, %130 : vector<32x64xf32>
    %cst_104 = arith.constant dense<0.000000e+00> : vector<64xf32>
    %132 = vector.multi_reduction <add>, %131, %cst_104 [0] : vector<32x64xf32> to vector<64xf32>
    %133 = vector.shape_cast %132 : vector<64xf32> to vector<1x64xf32>
    %cst_105 = arith.constant 3.125000e-02 : f32
    %134 = vector.broadcast %cst_105 : f32 to vector<1x64xf32>
    %135 = arith.mulf %133, %134 : vector<1x64xf32>
    %cst_106 = arith.constant dense<0.000000e+00> : vector<1x64xf32>
    %136 = tpu.matmul %135, %6, %cst_106 {dimension_numbers = #tpu.dot_dimension_numbers<[1], [0], [0], [1], [0, 0, 1, 1], [], []>} : vector<1x64xf32>, vector<64x64xf32>, vector<1x64xf32> -> vector<1x64xf32>
    %cst_107 = arith.constant 9.99999974E-6 : f32
    %137 = vector.broadcast %cst_107 : f32 to vector<1x64xf32>
    %138 = arith.addf %136, %137 : vector<1x64xf32>
    %139 = math.rsqrt %138 : vector<1x64xf32>
    %140 = arith.mulf %4, %139 : vector<1x64xf32>
    %141 = vector.broadcast %140 : vector<1x64xf32> to vector<32x64xf32>
    %142 = arith.mulf %130, %141 : vector<32x64xf32>
    %143 = vector.broadcast %5 : vector<1x64xf32> to vector<32x64xf32>
    %144 = arith.addf %142, %143 : vector<32x64xf32>
    %cst_108 = arith.constant 0.000000e+00 : f32
    %145 = vector.broadcast %cst_108 : f32 to vector<32x64xf32>
    %146 = arith.maximumf %144, %145 : vector<32x64xf32>
    %c0_109 = arith.constant 0 : index
    %c0_110 = arith.constant 0 : index
    %147 = vector.load %arg7[%c0_109, %c0_110] : memref<32x64xf32, #tpu.memory_space<vmem>>, vector<32x64xf32>
    tpu.vector_store %arg7[%c0_109, %c0_110], %146 {strides = array<i32>} : memref<32x64xf32, #tpu.memory_space<vmem>>, vector<32x64xf32>,
    return
  }
  func.func @transform_0(%arg0: i32) -> (i32, i32) {
    %c0_i32 = arith.constant 0 : i32
    %c0_i32_0 = arith.constant 0 : i32
    %c0_i32_1 = arith.constant 0 : i32
    return %c0_i32, %c0_i32_0 : i32, i32
  }
  func.func @transform_1(%arg0: i32) -> (i32, i32, i32) {
    %c0_i32 = arith.constant 0 : i32
    %c0_i32_0 = arith.constant 0 : i32
    %c0_i32_1 = arith.constant 0 : i32
    %c0_i32_2 = arith.constant 0 : i32
    return %c0_i32, %c0_i32_0, %c0_i32_1 : i32, i32, i32
  }
  func.func @transform_2(%arg0: i32) -> (i32, i32) {
    %c0_i32 = arith.constant 0 : i32
    %c0_i32_0 = arith.constant 0 : i32
    %c0_i32_1 = arith.constant 0 : i32
    return %c0_i32, %c0_i32_0 : i32, i32
  }
  func.func @transform_3(%arg0: i32) -> (i32, i32) {
    %c0_i32 = arith.constant 0 : i32
    %c0_i32_0 = arith.constant 0 : i32
    %c0_i32_1 = arith.constant 0 : i32
    return %c0_i32, %c0_i32_0 : i32, i32
  }
  func.func @transform_4(%arg0: i32) -> (i32, i32) {
    %c0_i32 = arith.constant 0 : i32
    %c0_i32_0 = arith.constant 0 : i32
    %c0_i32_1 = arith.constant 0 : i32
    return %c0_i32, %c0_i32_0 : i32, i32
  }
  func.func @transform_5(%arg0: i32) -> (i32, i32) {
    %c0_i32 = arith.constant 0 : i32
    %c0_i32_0 = arith.constant 0 : i32
    %c0_i32_1 = arith.constant 0 : i32
    return %c0_i32, %c0_i32_0 : i32, i32
  }
  func.func @transform_6(%arg0: i32) -> (i32, i32) {
    %c0_i32 = arith.constant 0 : i32
    %c0_i32_0 = arith.constant 0 : i32
    %c0_i32_1 = arith.constant 0 : i32
    return %c0_i32, %c0_i32_0 : i32, i32
  }
}

</mosaic_0001>

<llo_original>
// kernel: tpu_custom_call.1
$region0: #{tpu_custom_call.1}
  #allocation0 [shape = 'u32[]', space=smem, size = 0x4, offset = 0x4, fixed_abs, tag = 'smem constant byte address 0x4 - core index']
  #allocation1 [shape = 'u32[144,128]{1,0:T(1,128)}', space=vmem, size = 0x12000, scoped, tag = 'internal scratch']
  #allocation2 [shape = 'f32[2,18,64]{2,1,0:T(8,128)}', space=vmem, size = 0x6000, scoped, tag = 'scratch operand']
  %s0 = inlined_call_operand.hbm [shape: f32[32,64], index: 0, kind: input, shape index: {}]
  %s1 = inlined_call_operand.hbm [shape: f32[3,64,64], index: 1, kind: input, shape index: {}]
  %s2 = inlined_call_operand.vmem [shape: f32[1,64], index: 2, kind: input, shape index: {}]
  %s3 = inlined_call_operand.vmem [shape: f32[1,64], index: 3, kind: input, shape index: {}]
  %s4 = inlined_call_operand.vmem [shape: f32[1,64], index: 4, kind: input, shape index: {}]
  %s5 = inlined_call_operand.hbm [shape: f32[64,64], index: 5, kind: input, shape index: {}]
  %s6 = inlined_call_operand.hbm [shape: f32[32,64], index: 6, kind: output, shape index: {}]
  %s7 = sld [smem:[#allocation0]]
  $region46: #{tpu_custom_call.1} parent=0
    _
  %s9 = ssub.s32 1, %s7
  %s10 = scalar_select 0, %s9, %s7
  $region1: #{tpu_custom_call.1} parent=0
    #allocation3 [shape = 'u8[16384]{0}', space=vmem, size = 0x4000, scoped, tag = 'input window, operand 0, single buffered']
    #allocation4 [shape = 's32[1]{0}', space=sflag, size = 0x4, scoped, tag = 'scoped memory for tpu_custom_call.1']
    #allocation5 [shape = 's32[1]{0}', space=sflag, size = 0x4, scoped, tag = 'scoped memory for tpu_custom_call.1']
    #allocation6 [shape = 'u8[98304]{0}', space=vmem, size = 0x18000, scoped, tag = 'input window, operand 1, single buffered']
    #allocation7 [shape = 's32[1]{0}', space=sflag, size = 0x4, scoped, tag = 'scoped memory for tpu_custom_call.1']
    #allocation8 [shape = 'u8[32768]{0}', space=vmem, size = 0x8000, scoped, tag = 'input window, operand 5, single buffered']
    #allocation9 [shape = 'u8[16384]{0}', space=vmem, size = 0x4000, scoped, tag = 'output window, operand 0, single buffered']
    %11 = vsyncpa [#allocation4], 0
    %12 = vsyncpa [#allocation7], 0
    %13 = vsyncpa [#allocation5], 0
    // Predicated region
    $region2: #{tpu_custom_call.1} parent=1 // pred_check
      _
    $region3: #{tpu_custom_call.1} parent=1 // pred_check_branch
      %15 = sbr.rel (0) target = $region5
    $region4: #{tpu_custom_call.1} parent=1 // pred_region
      %s17 = ssub.s32 512, 512
      %18 = vsyncadd [#allocation4], %s17
      %s19 = sshll.u32 [#allocation3], 4
      %s20 = int_to_ptr.vmem [resolvable:$true] %s19
      %25 = dma.hbm_to_vmem [thread:$0]  %s0, 512, %s20, [#allocation4], 128, 128, 8
    $region5: #{tpu_custom_call.1} parent=1 // pred_fallthru
      _
    // Predicated region
    $region6: #{tpu_custom_call.1} parent=1 // pred_check
      _
    $region7: #{tpu_custom_call.1} parent=1 // pred_check_branch
      %27 = sbr.rel (0) target = $region9
    $region8: #{tpu_custom_call.1} parent=1 // pred_region
      %s29 = ssub.s32 3072, 3072
      %30 = vsyncadd [#allocation7], %s29
      %s31 = sshll.u32 [#allocation6], 4
      %s32 = int_to_ptr.vmem [resolvable:$true] %s31
      %37 = dma.hbm_to_vmem [thread:$0]  %s1, 3072, %s32, [#allocation7], 128, 128, 8
    $region9: #{tpu_custom_call.1} parent=1 // pred_fallthru
      _
    // Predicated region
    $region10: #{tpu_custom_call.1} parent=1 // pred_check
      _
    $region11: #{tpu_custom_call.1} parent=1 // pred_check_branch
      %39 = sbr.rel (0) target = $region13
    $region12: #{tpu_custom_call.1} parent=1 // pred_region
      _
    $region13: #{tpu_custom_call.1} parent=1 // pred_fallthru
      _
    // Predicated region
    $region14: #{tpu_custom_call.1} parent=1 // pred_check
      _
    $region15: #{tpu_custom_call.1} parent=1 // pred_check_branch
      %41 = sbr.rel (0) target = $region17
    $region16: #{tpu_custom_call.1} parent=1 // pred_region
      _
    $region17: #{tpu_custom_call.1} parent=1 // pred_fallthru
      _
    // Predicated region
    $region18: #{tpu_custom_call.1} parent=1 // pred_check
      _
    $region19: #{tpu_custom_call.1} parent=1 // pred_check_branch
      %43 = sbr.rel (0) target = $region21
    $region20: #{tpu_custom_call.1} parent=1 // pred_region
      _
    $region21: #{tpu_custom_call.1} parent=1 // pred_fallthru
      _
    // Predicated region
    $region22: #{tpu_custom_call.1} parent=1 // pred_check
      _
    $region23: #{tpu_custom_call.1} parent=1 // pred_check_branch
      %45 = sbr.rel (0) target = $region25
    $region24: #{tpu_custom_call.1} parent=1 // pred_region
      %s47 = ssub.s32 1024, 1024
      %48 = vsyncadd [#allocation7], %s47
      %s49 = sshll.u32 [#allocation8], 4
      %s50 = int_to_ptr.vmem [resolvable:$true] %s49
      %55 = dma.hbm_to_vmem [thread:$0]  %s5, 1024, %s50, [#allocation7], 128, 128, 8
    $region25: #{tpu_custom_call.1} parent=1 // pred_fallthru
      _
    // Predicated region
    $region26: #{tpu_custom_call.1} parent=1 // pred_check
      _
    $region27: #{tpu_custom_call.1} parent=1 // pred_check_branch
      %57 = sbr.rel (0) target = $region29
    $region28: #{tpu_custom_call.1} parent=1 // pred_region
      %58 = dma.done [#allocation4], 512
    $region29: #{tpu_custom_call.1} parent=1 // pred_fallthru
      _
    // Predicated region
    $region30: #{tpu_custom_call.1} parent=1 // pred_check
      _
    $region31: #{tpu_custom_call.1} parent=1 // pred_check_branch
      %60 = sbr.rel (0) target = $region33
    $region32: #{tpu_custom_call.1} parent=1 // pred_region
      %61 = dma.done [#allocation7], 3072
    $region33: #{tpu_custom_call.1} parent=1 // pred_fallthru
      _
    // Predicated region
    $region34: #{tpu_custom_call.1} parent=1 // pred_check
      _
    $region35: #{tpu_custom_call.1} parent=1 // pred_check_branch
      %63 = sbr.rel (0) target = $region37
    $region36: #{tpu_custom_call.1} parent=1 // pred_region
      %64 = dma.done [#allocation7], 1024
    $region37: #{tpu_custom_call.1} parent=1 // pred_fallthru
      _
    %vm65 = vcmask 523264
    %66 = vst.msk [vmem:[#allocation2] sm:$0xff] %vm65, 0.0
    %67 = vst.msk [vmem:[#allocation2 + $0x8] sm:$0xff] %vm65, 0.0
    %vm68 = vcmask 517120
    %69 = vst.msk [vmem:[#allocation2 + $0x10] sm:$0x3] %vm68, 0.0
    %70 = vst.msk [vmem:[#allocation2 + $0x18] sm:$0xff] %vm65, 0.0
    %71 = vst.msk [vmem:[#allocation2 + $0x20] sm:$0xff] %vm65, 0.0
    %72 = vst.msk [vmem:[#allocation2 + $0x28] sm:$0x3] %vm68, 0.0
    %v73 = vld [vmem:[#allocation3] sm:$0xff]
    %v74 = vld [vmem:[#allocation3 + $0x8] sm:$0xff]
    %v75 = vld [vmem:[#allocation3 + $0x10] sm:$0xff]
    %v76 = vld [vmem:[#allocation3 + $0x18] sm:$0xff]
    %v77 = vld [vmem:[%s2] sm:$0x1]
    %v78 = vld [vmem:[%s3] sm:$0x1]
    %v79 = vld [vmem:[%s4] sm:$0x1]
    %v80 = vld [vmem:[#allocation8] sm:$0xff]
    %v81 = vld [vmem:[#allocation8 + $0x8] sm:$0xff]
    %v82 = vld [vmem:[#allocation8 + $0x10] sm:$0xff]
    %v83 = vld [vmem:[#allocation8 + $0x18] sm:$0xff]
    %v84 = vld [vmem:[#allocation8 + $0x20] sm:$0xff]
    %v85 = vld [vmem:[#allocation8 + $0x28] sm:$0xff]
    %v86 = vld [vmem:[#allocation8 + $0x30] sm:$0xff]
    %v87 = vld [vmem:[#allocation8 + $0x38] sm:$0xff]
    %88 = vst.msk [vmem:[#allocation2 + $0x1] sm:$0xff] %vm65, %v73
    %89 = vst.msk [vmem:[#allocation2 + $0x9] sm:$0xff] %vm65, %v74
    %90 = vst.msk [vmem:[#allocation2 + $0x19] sm:$0xff] %vm65, %v75
    %91 = vst.msk [vmem:[#allocation2 + $0x21] sm:$0xff] %vm65, %v76
    %v92 = vld [vmem:[#allocation2] sm:$0xff]
    %v93 = vld [vmem:[#allocation2 + $0x8] sm:$0xff]
    %v94 = vld [vmem:[#allocation2 + $0x18] sm:$0xff]
    %v95 = vld [vmem:[#allocation2 + $0x20] sm:$0xff]
    %v96 = vld [vmem:[#allocation6] sm:$0xff]
    %v97 = vld [vmem:[#allocation6 + $0x8] sm:$0xff]
    %v98 = vld [vmem:[#allocation6 + $0x10] sm:$0xff]
    %v99 = vld [vmem:[#allocation6 + $0x18] sm:$0xff]
    %v100 = vld [vmem:[#allocation6 + $0x20] sm:$0xff]
    %v101 = vld [vmem:[#allocation6 + $0x28] sm:$0xff]
    %v102 = vld [vmem:[#allocation6 + $0x30] sm:$0xff]
    %v103 = vld [vmem:[#allocation6 + $0x38] sm:$0xff]
    %v104 = vld [vmem:[#allocation2 + $0x1] sm:$0xff]
    %v105 = vld [vmem:[#allocation2 + $0x9] sm:$0xff]
    %v106 = vld [vmem:[#allocation2 + $0x19] sm:$0xff]
    %v107 = vld [vmem:[#allocation2 + $0x21] sm:$0xff]
    %s108 = scalar_lea.vmem [#allocation6], 64
    %v109 = vld [vmem:[%s108] sm:$0xff]
    %v110 = vld [vmem:[%s108 + $0x8] sm:$0xff]
    %v111 = vld [vmem:[%s108 + $0x10] sm:$0xff]
    %v112 = vld [vmem:[%s108 + $0x18] sm:$0xff]
    %v113 = vld [vmem:[%s108 + $0x20] sm:$0xff]
    %v114 = vld [vmem:[%s108 + $0x28] sm:$0xff]
    %v115 = vld [vmem:[%s108 + $0x30] sm:$0xff]
    %v116 = vld [vmem:[%s108 + $0x38] sm:$0xff]
    %v118 = vsel %vm65, %v104, 0
    %v121 = vsel %vm65, %v105, 0
    %v124 = vsel %vm65, %v106, 0
    %v127 = vsel %vm65, %v107, 0
    %129 = vmatprep.subr.mxu0 0.0
    %130 = vmatpush1.msra.mxu0 %v109
    %131 = vmatprep.subr.mxu0 0.0
    %132 = vmatpush1.msra.mxu0 %v110
    %133 = vmatprep.subr.mxu0 0.0
    %134 = vmatpush1.msra.mxu0 %v111
    %135 = vmatprep.subr.mxu0 0.0
    %136 = vmatpush1.msra.mxu0 %v112
    %137 = vmatprep.subr.mxu0 0.0
    %138 = vmatpush1.msra.mxu0 %v113
    %139 = vmatprep.subr.mxu0 0.0
    %140 = vmatpush1.msra.mxu0 %v114
    %141 = vmatprep.subr.mxu0 0.0
    %142 = vmatpush1.msra.mxu0 %v115
    %143 = vmatprep.subr.mxu0 0.0
    %144 = vmatpush1.msra.mxu0 %v116
    %145 = vmatprep.subr.mxu0 0.0
    %146 = vmatpush1.msra.mxu0 0.0
    %147 = vmatprep.subr.mxu0 0.0
    %148 = vmatpush1.msra.mxu0 0.0
    %149 = vmatprep.subr.mxu0 0.0
    %150 = vmatpush1.msra.mxu0 0.0
    %151 = vmatprep.subr.mxu0 0.0
    %152 = vmatpush1.msra.mxu0 0.0
    %153 = vmatprep.subr.mxu0 0.0
    %154 = vmatpush1.msra.mxu0 0.0
    %155 = vmatprep.subr.mxu0 0.0
    %156 = vmatpush1.msra.mxu0 0.0
    %157 = vmatprep.subr.mxu0 0.0
    %158 = vmatpush1.msra.mxu0 0.0
    %159 = vmatprep.subr.mxu0 0.0
    %160 = vmatpush1.msra.mxu0 0.0
    %161 = vmatprep.subr.mxu0 0.0
    %162 = vmatpush1.msra.mxu0 0.0
    %163 = vmatprep.subr.mxu0 0.0
    %164 = vmatpush1.msra.mxu0 0.0
    %165 = vmatprep.subr.mxu0 0.0
    %166 = vmatpush1.msra.mxu0 0.0
    %167 = vmatprep.subr.mxu0 0.0
    %168 = vmatpush1.msra.mxu0 0.0
    %169 = vmatprep.subr.mxu0 0.0
    %170 = vmatpush1.msra.mxu0 0.0
    %171 = vmatprep.subr.mxu0 0.0
    %172 = vmatpush1.msra.mxu0 0.0
    %173 = vmatprep.subr.mxu0 0.0
    %174 = vmatpush1.msra.mxu0 0.0
    %175 = vmatprep.subr.mxu0 0.0
    %176 = vmatpush1.msra.mxu0 0.0
    %177 = vmatprep.subr.mxu0 0.0
    %178 = vmatpush1.msra.mxu0 0.0
    %179 = vmatprep.subr.mxu0 0.0
    %180 = vmatpush1.msra.mxu0 0.0
    %181 = vmatprep.subr.mxu0 0.0
    %182 = vmatpush1.msra.mxu0 0.0
    %183 = vmatprep.subr.mxu0 0.0
    %184 = vmatpush1.msra.mxu0 0.0
    %185 = vmatprep.subr.mxu0 0.0
    %186 = vmatpush1.msra.mxu0 0.0
    %187 = vmatprep.subr.mxu0 0.0
    %188 = vmatpush1.msra.mxu0 0.0
    %189 = vmatprep.subr.mxu0 0.0
    %190 = vmatpush1.msra.mxu0 0.0
    %191 = vmatprep.subr.mxu0 0.0
    %192 = vmatpush1.msra.mxu0 0.0
    %193 = vmatprep.mubr.f32.mxu0 0.0
    %194 = vmatmul.mubr.f32.gmra.mrb[0].mxu0 %v118
    %v195 = vpop.f32.mrb[0].mxu0
    %v196 = vadd.f32 0.0, %v195
    %v197 = vpop.f32.mrb[0].mxu0
    %198 = vmatprep.mubr.f32.mxu0 0.0
    %199 = vmatmul.mubr.f32.gmra.mrb[0].mxu0 %v121
    %v200 = vpop.f32.mrb[0].mxu0
    %v201 = vadd.f32 0.0, %v200
    %v202 = vpop.f32.mrb[0].mxu0
    %203 = vmatprep.mubr.f32.mxu0 0.0
    %204 = vmatmul.mubr.f32.gmra.mrb[0].mxu0 %v124
    %v205 = vpop.f32.mrb[0].mxu0
    %v206 = vadd.f32 0.0, %v205
    %v207 = vpop.f32.mrb[0].mxu0
    %208 = vmatprep.mubr.f32.mxu0 0.0
    %209 = vmatmul.mubr.f32.gmra.mrb[0].mxu0 %v127
    %v210 = vpop.f32.mrb[0].mxu0
    %v211 = vadd.f32 0.0, %v210
    %v212 = vpop.f32.mrb[0].mxu0
    %213 = vdwg.mxu0
    %v215 = vsel %vm65, %v92, 0
    %v218 = vsel %vm65, %v93, 0
    %v221 = vsel %vm65, %v94, 0
    %v224 = vsel %vm65, %v95, 0
    %226 = vmatprep.subr.mxu0 0.0
    %227 = vmatpush1.msra.mxu0 %v96
    %228 = vmatprep.subr.mxu0 0.0
    %229 = vmatpush1.msra.mxu0 %v97
    %230 = vmatprep.subr.mxu0 0.0
    %231 = vmatpush1.msra.mxu0 %v98
    %232 = vmatprep.subr.mxu0 0.0
    %233 = vmatpush1.msra.mxu0 %v99
    %234 = vmatprep.subr.mxu0 0.0
    %235 = vmatpush1.msra.mxu0 %v100
    %236 = vmatprep.subr.mxu0 0.0
    %237 = vmatpush1.msra.mxu0 %v101
    %238 = vmatprep.subr.mxu0 0.0
    %239 = vmatpush1.msra.mxu0 %v102
    %240 = vmatprep.subr.mxu0 0.0
    %241 = vmatpush1.msra.mxu0 %v103
    %242 = vmatprep.subr.mxu0 0.0
    %243 = vmatpush1.msra.mxu0 0.0
    %244 = vmatprep.subr.mxu0 0.0
    %245 = vmatpush1.msra.mxu0 0.0
    %246 = vmatprep.subr.mxu0 0.0
    %247 = vmatpush1.msra.mxu0 0.0
    %248 = vmatprep.subr.mxu0 0.0
    %249 = vmatpush1.msra.mxu0 0.0
    %250 = vmatprep.subr.mxu0 0.0
    %251 = vmatpush1.msra.mxu0 0.0
    %252 = vmatprep.subr.mxu0 0.0
    %253 = vmatpush1.msra.mxu0 0.0
    %254 = vmatprep.subr.mxu0 0.0
    %255 = vmatpush1.msra.mxu0 0.0
    %256 = vmatprep.subr.mxu0 0.0
    %257 = vmatpush1.msra.mxu0 0.0
    %258 = vmatprep.subr.mxu0 0.0
    %259 = vmatpush1.msra.mxu0 0.0
    %260 = vmatprep.subr.mxu0 0.0
    %261 = vmatpush1.msra.mxu0 0.0
    %262 = vmatprep.subr.mxu0 0.0
    %263 = vmatpush1.msra.mxu0 0.0
    %264 = vmatprep.subr.mxu0 0.0
    %265 = vmatpush1.msra.mxu0 0.0
    %266 = vmatprep.subr.mxu0 0.0
    %267 = vmatpush1.msra.mxu0 0.0
    %268 = vmatprep.subr.mxu0 0.0
    %269 = vmatpush1.msra.mxu0 0.0
    %270 = vmatprep.subr.mxu0 0.0
    %271 = vmatpush1.msra.mxu0 0.0
    %272 = vmatprep.subr.mxu0 0.0
    %273 = vmatpush1.msra.mxu0 0.0
    %274 = vmatprep.subr.mxu0 0.0
    %275 = vmatpush1.msra.mxu0 0.0
    %276 = vmatprep.subr.mxu0 0.0
    %277 = vmatpush1.msra.mxu0 0.0
    %278 = vmatprep.subr.mxu0 0.0
    %279 = vmatpush1.msra.mxu0 0.0
    %280 = vmatprep.subr.mxu0 0.0
    %281 = vmatpush1.msra.mxu0 0.0
    %282 = vmatprep.subr.mxu0 0.0
    %283 = vmatpush1.msra.mxu0 0.0
    %284 = vmatprep.subr.mxu0 0.0
    %285 = vmatpush1.msra.mxu0 0.0
    %286 = vmatprep.subr.mxu0 0.0
    %287 = vmatpush1.msra.mxu0 0.0
    %288 = vmatprep.subr.mxu0 0.0
    %289 = vmatpush1.msra.mxu0 0.0
    %290 = vmatprep.mubr.f32.mxu0 0.0
    %291 = vmatmul.mubr.f32.gmra.mrb[0].mxu0 %v215
    %v292 = vpop.f32.mrb[0].mxu0
    %v293 = vadd.f32 %v196, %v292
    %v294 = vpop.f32.mrb[0].mxu0
    %295 = vmatprep.mubr.f32.mxu0 0.0
    %296 = vmatmul.mubr.f32.gmra.mrb[0].mxu0 %v218
    %v297 = vpop.f32.mrb[0].mxu0
    %v298 = vadd.f32 %v201, %v297
    %v299 = vpop.f32.mrb[0].mxu0
    %300 = vmatprep.mubr.f32.mxu0 0.0
    %301 = vmatmul.mubr.f32.gmra.mrb[0].mxu0 %v221
    %v302 = vpop.f32.mrb[0].mxu0
    %v303 = vadd.f32 %v206, %v302
    %v304 = vpop.f32.mrb[0].mxu0
    %305 = vmatprep.mubr.f32.mxu0 0.0
    %306 = vmatmul.mubr.f32.gmra.mrb[0].mxu0 %v224
    %v307 = vpop.f32.mrb[0].mxu0
    %v308 = vadd.f32 %v211, %v307
    %v309 = vpop.f32.mrb[0].mxu0
    %310 = vdwg.mxu0
    %v311 = vld [vmem:[#allocation2 + $0x2] sm:$0xff]
    %v312 = vld [vmem:[#allocation2 + $0xa] sm:$0xff]
    %v313 = vld [vmem:[#allocation2 + $0x1a] sm:$0xff]
    %v314 = vld [vmem:[#allocation2 + $0x22] sm:$0xff]
    %s315 = scalar_lea.vmem [#allocation6], 128
    %v316 = vld [vmem:[%s315] sm:$0xff]
    %v317 = vld [vmem:[%s315 + $0x8] sm:$0xff]
    %v318 = vld [vmem:[%s315 + $0x10] sm:$0xff]
    %v319 = vld [vmem:[%s315 + $0x18] sm:$0xff]
    %v320 = vld [vmem:[%s315 + $0x20] sm:$0xff]
    %v321 = vld [vmem:[%s315 + $0x28] sm:$0xff]
    %v322 = vld [vmem:[%s315 + $0x30] sm:$0xff]
    %v323 = vld [vmem:[%s315 + $0x38] sm:$0xff]
    %v325 = vsel %vm65, %v311, 0
    %v328 = vsel %vm65, %v312, 0
    %v331 = vsel %vm65, %v313, 0
    %v334 = vsel %vm65, %v314, 0
    %336 = vmatprep.subr.mxu0 0.0
    %337 = vmatpush1.msra.mxu0 %v316
    %338 = vmatprep.subr.mxu0 0.0
    %339 = vmatpush1.msra.mxu0 %v317
    %340 = vmatprep.subr.mxu0 0.0
    %341 = vmatpush1.msra.mxu0 %v318
    %342 = vmatprep.subr.mxu0 0.0
    %343 = vmatpush1.msra.mxu0 %v319
    %344 = vmatprep.subr.mxu0 0.0
    %345 = vmatpush1.msra.mxu0 %v320
    %346 = vmatprep.subr.mxu0 0.0
    %347 = vmatpush1.msra.mxu0 %v321
    %348 = vmatprep.subr.mxu0 0.0
    %349 = vmatpush1.msra.mxu0 %v322
    %350 = vmatprep.subr.mxu0 0.0
    %351 = vmatpush1.msra.mxu0 %v323
    %352 = vmatprep.subr.mxu0 0.0
    %353 = vmatpush1.msra.mxu0 0.0
    %354 = vmatprep.subr.mxu0 0.0
    %355 = vmatpush1.msra.mxu0 0.0
    %356 = vmatprep.subr.mxu0 0.0
    %357 = vmatpush1.msra.mxu0 0.0
    %358 = vmatprep.subr.mxu0 0.0
    %359 = vmatpush1.msra.mxu0 0.0
    %360 = vmatprep.subr.mxu0 0.0
    %361 = vmatpush1.msra.mxu0 0.0
    %362 = vmatprep.subr.mxu0 0.0
    %363 = vmatpush1.msra.mxu0 0.0
    %364 = vmatprep.subr.mxu0 0.0
    %365 = vmatpush1.msra.mxu0 0.0
    %366 = vmatprep.subr.mxu0 0.0
    %367 = vmatpush1.msra.mxu0 0.0
    %368 = vmatprep.subr.mxu0 0.0
    %369 = vmatpush1.msra.mxu0 0.0
    %370 = vmatprep.subr.mxu0 0.0
    %371 = vmatpush1.msra.mxu0 0.0
    %372 = vmatprep.subr.mxu0 0.0
    %373 = vmatpush1.msra.mxu0 0.0
    %374 = vmatprep.subr.mxu0 0.0
    %375 = vmatpush1.msra.mxu0 0.0
    %376 = vmatprep.subr.mxu0 0.0
    %377 = vmatpush1.msra.mxu0 0.0
    %378 = vmatprep.subr.mxu0 0.0
    %379 = vmatpush1.msra.mxu0 0.0
    %380 = vmatprep.subr.mxu0 0.0
    %381 = vmatpush1.msra.mxu0 0.0
    %382 = vmatprep.subr.mxu0 0.0
    %383 = vmatpush1.msra.mxu0 0.0
    %384 = vmatprep.subr.mxu0 0.0
    %385 = vmatpush1.msra.mxu0 0.0
    %386 = vmatprep.subr.mxu0 0.0
    %387 = vmatpush1.msra.mxu0 0.0
    %388 = vmatprep.subr.mxu0 0.0
    %389 = vmatpush1.msra.mxu0 0.0
    %390 = vmatprep.subr.mxu0 0.0
    %391 = vmatpush1.msra.mxu0 0.0
    %392 = vmatprep.subr.mxu0 0.0
    %393 = vmatpush1.msra.mxu0 0.0
    %394 = vmatprep.subr.mxu0 0.0
    %395 = vmatpush1.msra.mxu0 0.0
    %396 = vmatprep.subr.mxu0 0.0
    %397 = vmatpush1.msra.mxu0 0.0
    %398 = vmatprep.subr.mxu0 0.0
    %399 = vmatpush1.msra.mxu0 0.0
    %400 = vmatprep.mubr.f32.mxu0 0.0
    %401 = vmatmul.mubr.f32.gmra.mrb[0].mxu0 %v325
    %v402 = vpop.f32.mrb[0].mxu0
    %v403 = vadd.f32 0.0, %v402
    %v404 = vpop.f32.mrb[0].mxu0
    %405 = vmatprep.mubr.f32.mxu0 0.0
    %406 = vmatmul.mubr.f32.gmra.mrb[0].mxu0 %v328
    %v407 = vpop.f32.mrb[0].mxu0
    %v408 = vadd.f32 0.0, %v407
    %v409 = vpop.f32.mrb[0].mxu0
    %410 = vmatprep.mubr.f32.mxu0 0.0
    %411 = vmatmul.mubr.f32.gmra.mrb[0].mxu0 %v331
    %v412 = vpop.f32.mrb[0].mxu0
    %v413 = vadd.f32 0.0, %v412
    %v414 = vpop.f32.mrb[0].mxu0
    %415 = vmatprep.mubr.f32.mxu0 0.0
    %416 = vmatmul.mubr.f32.gmra.mrb[0].mxu0 %v334
    %v417 = vpop.f32.mrb[0].mxu0
    %v418 = vadd.f32 0.0, %v417
    %v419 = vpop.f32.mrb[0].mxu0
    %420 = vdwg.mxu0
    %v421 = vadd.f32 %v293, %v403
    %v422 = vadd.f32 %v298, %v408
    %v423 = vadd.f32 %v303, %v413
    %v424 = vadd.f32 %v308, %v418
    %v426 = vlaneseq
    %v427 = vshrl.u32 %v426, 7
    %v428 = vsub.s32 0, %v427
    %v429 = vrot.slane %v77, %v428
    %v431 = vadd.f32 %v421, %v429
    %v432 = vadd.f32 %v422, %v429
    %v433 = vadd.f32 %v423, %v429
    %v434 = vadd.f32 %v424, %v429
    %v435 = vsel %vm65, %v431, 0.0
    %v436 = vsel %vm65, %v432, 0.0
    %v437 = vadd.f32 %v435, %v436
    %v438 = vsel %vm65, %v433, 0.0
    %v439 = vadd.f32 %v437, %v438
    %v440 = vsel %vm65, %v434, 0.0
    %v441 = vadd.f32 %v439, %v440
    %v442 = vrot.slane %v441, 4
    %v443 = vadd.f32 %v441, %v442
    %v444 = vrot.slane %v443, 2
    %v445 = vadd.f32 %v443, %v444
    %v446 = vrot.slane %v445, 1
    %v447 = vadd.f32 %v445, %v446
    %v448 = vmul.f32 %v447, 0.03125
    %v450 = vsel %vm65, %v448, 0
    %452 = vmatprep.subr.mxu0 0.0
    %453 = vmatpush1.msra.mxu0 %v80
    %454 = vmatprep.subr.mxu0 0.0
    %455 = vmatpush1.msra.mxu0 %v81
    %456 = vmatprep.subr.mxu0 0.0
    %457 = vmatpush1.msra.mxu0 %v82
    %458 = vmatprep.subr.mxu0 0.0
    %459 = vmatpush1.msra.mxu0 %v83
    %460 = vmatprep.subr.mxu0 0.0
    %461 = vmatpush1.msra.mxu0 %v84
    %462 = vmatprep.subr.mxu0 0.0
    %463 = vmatpush1.msra.mxu0 %v85
    %464 = vmatprep.subr.mxu0 0.0
    %465 = vmatpush1.msra.mxu0 %v86
    %466 = vmatprep.subr.mxu0 0.0
    %467 = vmatpush1.msra.mxu0 %v87
    %468 = vmatprep.subr.mxu0 0.0
    %469 = vmatpush1.msra.mxu0 0.0
    %470 = vmatprep.subr.mxu0 0.0
    %471 = vmatpush1.msra.mxu0 0.0
    %472 = vmatprep.subr.mxu0 0.0
    %473 = vmatpush1.msra.mxu0 0.0
    %474 = vmatprep.subr.mxu0 0.0
    %475 = vmatpush1.msra.mxu0 0.0
    %476 = vmatprep.subr.mxu0 0.0
    %477 = vmatpush1.msra.mxu0 0.0
    %478 = vmatprep.subr.mxu0 0.0
    %479 = vmatpush1.msra.mxu0 0.0
    %480 = vmatprep.subr.mxu0 0.0
    %481 = vmatpush1.msra.mxu0 0.0
    %482 = vmatprep.subr.mxu0 0.0
    %483 = vmatpush1.msra.mxu0 0.0
    %484 = vmatprep.subr.mxu0 0.0
    %485 = vmatpush1.msra.mxu0 0.0
    %486 = vmatprep.subr.mxu0 0.0
    %487 = vmatpush1.msra.mxu0 0.0
    %488 = vmatprep.subr.mxu0 0.0
    %489 = vmatpush1.msra.mxu0 0.0
    %490 = vmatprep.subr.mxu0 0.0
    %491 = vmatpush1.msra.mxu0 0.0
    %492 = vmatprep.subr.mxu0 0.0
    %493 = vmatpush1.msra.mxu0 0.0
    %494 = vmatprep.subr.mxu0 0.0
    %495 = vmatpush1.msra.mxu0 0.0
    %496 = vmatprep.subr.mxu0 0.0
    %497 = vmatpush1.msra.mxu0 0.0
    %498 = vmatprep.subr.mxu0 0.0
    %499 = vmatpush1.msra.mxu0 0.0
    %500 = vmatprep.subr.mxu0 0.0
    %501 = vmatpush1.msra.mxu0 0.0
    %502 = vmatprep.subr.mxu0 0.0
    %503 = vmatpush1.msra.mxu0 0.0
    %504 = vmatprep.subr.mxu0 0.0
    %505 = vmatpush1.msra.mxu0 0.0
    %506 = vmatprep.subr.mxu0 0.0
    %507 = vmatpush1.msra.mxu0 0.0
    %508 = vmatprep.subr.mxu0 0.0
    %509 = vmatpush1.msra.mxu0 0.0
    %510 = vmatprep.subr.mxu0 0.0
    %511 = vmatpush1.msra.mxu0 0.0
    %512 = vmatprep.subr.mxu0 0.0
    %513 = vmatpush1.msra.mxu0 0.0
    %514 = vmatprep.subr.mxu0 0.0
    %515 = vmatpush1.msra.mxu0 0.0
    %516 = vmatprep.mubr.f32.mxu0 0.0
    %517 = vmatmul.mubr.f32.gmra.mrb[0].mxu0 %v450
    %v518 = vpop.f32.mrb[0].mxu0
    %v519 = vadd.f32 0.0, %v518
    %v520 = vpop.f32.mrb[0].mxu0
    %521 = vdwg.mxu0
    %v522 = vlaneseq
    %v523 = vshrl.u32 %v522, 7
    %v524 = vsub.s32 0, %v523
    %v525 = vrot.slane %v519, %v524
    %v526 = vsub.f32 %v431, %v525
    %v527 = vsub.f32 %v432, %v525
    %v528 = vsub.f32 %v433, %v525
    %v529 = vsub.f32 %v434, %v525
    %v530 = vmul.f32 %v526, %v526
    %v531 = vmul.f32 %v527, %v527
    %v532 = vmul.f32 %v528, %v528
    %v533 = vmul.f32 %v529, %v529
    %v534 = vsel %vm65, %v530, 0.0
    %v535 = vsel %vm65, %v531, 0.0
    %v536 = vadd.f32 %v534, %v535
    %v537 = vsel %vm65, %v532, 0.0
    %v538 = vadd.f32 %v536, %v537
    %v539 = vsel %vm65, %v533, 0.0
    %v540 = vadd.f32 %v538, %v539
    %v541 = vrot.slane %v540, 4
    %v542 = vadd.f32 %v540, %v541
    %v543 = vrot.slane %v542, 2
    %v544 = vadd.f32 %v542, %v543
    %v545 = vrot.slane %v544, 1
    %v546 = vadd.f32 %v544, %v545
    %v547 = vmul.f32 %v546, 0.03125
    %v549 = vsel %vm65, %v547, 0
    %551 = vmatprep.subr.mxu0 0.0
    %552 = vmatpush1.msra.mxu0 %v80
    %553 = vmatprep.subr.mxu0 0.0
    %554 = vmatpush1.msra.mxu0 %v81
    %555 = vmatprep.subr.mxu0 0.0
    %556 = vmatpush1.msra.mxu0 %v82
    %557 = vmatprep.subr.mxu0 0.0
    %558 = vmatpush1.msra.mxu0 %v83
    %559 = vmatprep.subr.mxu0 0.0
    %560 = vmatpush1.msra.mxu0 %v84
    %561 = vmatprep.subr.mxu0 0.0
    %562 = vmatpush1.msra.mxu0 %v85
    %563 = vmatprep.subr.mxu0 0.0
    %564 = vmatpush1.msra.mxu0 %v86
    %565 = vmatprep.subr.mxu0 0.0
    %566 = vmatpush1.msra.mxu0 %v87
    %567 = vmatprep.subr.mxu0 0.0
    %568 = vmatpush1.msra.mxu0 0.0
    %569 = vmatprep.subr.mxu0 0.0
    %570 = vmatpush1.msra.mxu0 0.0
    %571 = vmatprep.subr.mxu0 0.0
    %572 = vmatpush1.msra.mxu0 0.0
    %573 = vmatprep.subr.mxu0 0.0
    %574 = vmatpush1.msra.mxu0 0.0
    %575 = vmatprep.subr.mxu0 0.0
    %576 = vmatpush1.msra.mxu0 0.0
    %577 = vmatprep.subr.mxu0 0.0
    %578 = vmatpush1.msra.mxu0 0.0
    %579 = vmatprep.subr.mxu0 0.0
    %580 = vmatpush1.msra.mxu0 0.0
    %581 = vmatprep.subr.mxu0 0.0
    %582 = vmatpush1.msra.mxu0 0.0
    %583 = vmatprep.subr.mxu0 0.0
    %584 = vmatpush1.msra.mxu0 0.0
    %585 = vmatprep.subr.mxu0 0.0
    %586 = vmatpush1.msra.mxu0 0.0
    %587 = vmatprep.subr.mxu0 0.0
    %588 = vmatpush1.msra.mxu0 0.0
    %589 = vmatprep.subr.mxu0 0.0
    %590 = vmatpush1.msra.mxu0 0.0
    %591 = vmatprep.subr.mxu0 0.0
    %592 = vmatpush1.msra.mxu0 0.0
    %593 = vmatprep.subr.mxu0 0.0
    %594 = vmatpush1.msra.mxu0 0.0
    %595 = vmatprep.subr.mxu0 0.0
    %596 = vmatpush1.msra.mxu0 0.0
    %597 = vmatprep.subr.mxu0 0.0
    %598 = vmatpush1.msra.mxu0 0.0
    %599 = vmatprep.subr.mxu0 0.0
    %600 = vmatpush1.msra.mxu0 0.0
    %601 = vmatprep.subr.mxu0 0.0
    %602 = vmatpush1.msra.mxu0 0.0
    %603 = vmatprep.subr.mxu0 0.0
    %604 = vmatpush1.msra.mxu0 0.0
    %605 = vmatprep.subr.mxu0 0.0
    %606 = vmatpush1.msra.mxu0 0.0
    %607 = vmatprep.subr.mxu0 0.0
    %608 = vmatpush1.msra.mxu0 0.0
    %609 = vmatprep.subr.mxu0 0.0
    %610 = vmatpush1.msra.mxu0 0.0
    %611 = vmatprep.subr.mxu0 0.0
    %612 = vmatpush1.msra.mxu0 0.0
    %613 = vmatprep.subr.mxu0 0.0
    %614 = vmatpush1.msra.mxu0 0.0
    %615 = vmatprep.mubr.f32.mxu0 0.0
    %616 = vmatmul.mubr.f32.gmra.mrb[0].mxu0 %v549
    %v617 = vpop.f32.mrb[0].mxu0
    %v618 = vadd.f32 1e-05, %v617
    %v619 = vpop.f32.mrb[0].mxu0
    %620 = vdwg.mxu0
    %v621 = vrsqrt.pop %v618
    %v622 = vmul.f32 %v78, %v621
    %v624 = vlaneseq
    %v625 = vshrl.u32 %v624, 7
    %v626 = vsub.s32 0, %v625
    %v627 = vrot.slane %v622, %v626
    %v629 = vmul.f32 %v526, %v627
    %v630 = vmul.f32 %v527, %v627
    %v631 = vmul.f32 %v528, %v627
    %v632 = vmul.f32 %v529, %v627
    %v634 = vlaneseq
    %v635 = vshrl.u32 %v634, 7
    %v636 = vsub.s32 0, %v635
    %v637 = vrot.slane %v79, %v636
    %v639 = vadd.f32 %v629, %v637
    %v640 = vadd.f32 %v630, %v637
    %v641 = vadd.f32 %v631, %v637
    %v642 = vadd.f32 %v632, %v637
    %v643 = vmax.f32 %v639, 0.0
    %v644 = vmax.f32 %v640, 0.0
    %v645 = vmax.f32 %v641, 0.0
    %v646 = vmax.f32 %v642, 0.0
    %v647 = vadd.f32 %v73, %v643
    %v648 = vadd.f32 %v74, %v644
    %v649 = vadd.f32 %v75, %v645
    %v650 = vadd.f32 %v76, %v646
    %651 = vst.msk [vmem:[#allocation2 + $0x1] sm:$0xff] %vm65, %v647
    %652 = vst.msk [vmem:[#allocation2 + $0x9] sm:$0xff] %vm65, %v648
    %653 = vst.msk [vmem:[#allocation2 + $0x19] sm:$0xff] %vm65, %v649
    %654 = vst.msk [vmem:[#allocation2 + $0x21] sm:$0xff] %vm65, %v650
    %v655 = vld [vmem:[#allocation2] sm:$0xff]
    %v656 = vld [vmem:[#allocation2 + $0x8] sm:$0xff]
    %v657 = vld [vmem:[#allocation2 + $0x18] sm:$0xff]
    %v658 = vld [vmem:[#allocation2 + $0x20] sm:$0xff]
    %v659 = vld [vmem:[#allocation6] sm:$0xff]
    %v660 = vld [vmem:[#allocation6 + $0x8] sm:$0xff]
    %v661 = vld [vmem:[#allocation6 + $0x10] sm:$0xff]
    %v662 = vld [vmem:[#allocation6 + $0x18] sm:$0xff]
    %v663 = vld [vmem:[#allocation6 + $0x20] sm:$0xff]
    %v664 = vld [vmem:[#allocation6 + $0x28] sm:$0xff]
    %v665 = vld [vmem:[#allocation6 + $0x30] sm:$0xff]
    %v666 = vld [vmem:[#allocation6 + $0x38] sm:$0xff]
    %v667 = vld [vmem:[#allocation2 + $0x1] sm:$0xff]
    %v668 = vld [vmem:[#allocation2 + $0x9] sm:$0xff]
    %v669 = vld [vmem:[#allocation2 + $0x19] sm:$0xff]
    %v670 = vld [vmem:[#allocation2 + $0x21] sm:$0xff]
    %v671 = vld [vmem:[%s108] sm:$0xff]
    %v672 = vld [vmem:[%s108 + $0x8] sm:$0xff]
    %v673 = vld [vmem:[%s108 + $0x10] sm:$0xff]
    %v674 = vld [vmem:[%s108 + $0x18] sm:$0xff]
    %v675 = vld [vmem:[%s108 + $0x20] sm:$0xff]
    %v676 = vld [vmem:[%s108 + $0x28] sm:$0xff]
    %v677 = vld [vmem:[%s108 + $0x30] sm:$0xff]
    %v678 = vld [vmem:[%s108 + $0x38] sm:$0xff]
    %v680 = vsel %vm65, %v667, 0
    %v683 = vsel %vm65, %v668, 0
    %v686 = vsel %vm65, %v669, 0
    %v689 = vsel %vm65, %v670, 0
    %691 = vmatprep.subr.mxu0 0.0
    %692 = vmatpush1.msra.mxu0 %v671
    %693 = vmatprep.subr.mxu0 0.0
    %694 = vmatpush1.msra.mxu0 %v672
    %695 = vmatprep.subr.mxu0 0.0
    %696 = vmatpush1.msra.mxu0 %v673
    %697 = vmatprep.subr.mxu0 0.0
    %698 = vmatpush1.msra.mxu0 %v674
    %699 = vmatprep.subr.mxu0 0.0
    %700 = vmatpush1.msra.mxu0 %v675
    %701 = vmatprep.subr.mxu0 0.0
    %702 = vmatpush1.msra.mxu0 %v676
    %703 = vmatprep.subr.mxu0 0.0
    %704 = vmatpush1.msra.mxu0 %v677
    %705 = vmatprep.subr.mxu0 0.0
    %706 = vmatpush1.msra.mxu0 %v678
    %707 = vmatprep.subr.mxu0 0.0
    %708 = vmatpush1.msra.mxu0 0.0
    %709 = vmatprep.subr.mxu0 0.0
    %710 = vmatpush1.msra.mxu0 0.0
    %711 = vmatprep.subr.mxu0 0.0
    %712 = vmatpush1.msra.mxu0 0.0
    %713 = vmatprep.subr.mxu0 0.0
    %714 = vmatpush1.msra.mxu0 0.0
    %715 = vmatprep.subr.mxu0 0.0
    %716 = vmatpush1.msra.mxu0 0.0
    %717 = vmatprep.subr.mxu0 0.0
    %718 = vmatpush1.msra.mxu0 0.0
    %719 = vmatprep.subr.mxu0 0.0
    %720 = vmatpush1.msra.mxu0 0.0
    %721 = vmatprep.subr.mxu0 0.0
    %722 = vmatpush1.msra.mxu0 0.0
    %723 = vmatprep.subr.mxu0 0.0
    %724 = vmatpush1.msra.mxu0 0.0
    %725 = vmatprep.subr.mxu0 0.0
    %726 = vmatpush1.msra.mxu0 0.0
    %727 = vmatprep.subr.mxu0 0.0
    %728 = vmatpush1.msra.mxu0 0.0
    %729 = vmatprep.subr.mxu0 0.0
    %730 = vmatpush1.msra.mxu0 0.0
    %731 = vmatprep.subr.mxu0 0.0
    %732 = vmatpush1.msra.mxu0 0.0
    %733 = vmatprep.subr.mxu0 0.0
    %734 = vmatpush1.msra.mxu0 0.0
    %735 = vmatprep.subr.mxu0 0.0
    %736 = vmatpush1.msra.mxu0 0.0
    %737 = vmatprep.subr.mxu0 0.0
    %738 = vmatpush1.msra.mxu0 0.0
    %739 = vmatprep.subr.mxu0 0.0
    %740 = vmatpush1.msra.mxu0 0.0
    %741 = vmatprep.subr.mxu0 0.0
    %742 = vmatpush1.msra.mxu0 0.0
    %743 = vmatprep.subr.mxu0 0.0
    %744 = vmatpush1.msra.mxu0 0.0
    %745 = vmatprep.subr.mxu0 0.0
    %746 = vmatpush1.msra.mxu0 0.0
    %747 = vmatprep.subr.mxu0 0.0
    %748 = vmatpush1.msra.mxu0 0.0
    %749 = vmatprep.subr.mxu0 0.0
    %750 = vmatpush1.msra.mxu0 0.0
    %751 = vmatprep.subr.mxu0 0.0
    %752 = vmatpush1.msra.mxu0 0.0
    %753 = vmatprep.subr.mxu0 0.0
    %754 = vmatpush1.msra.mxu0 0.0
    %755 = vmatprep.mubr.f32.mxu0 0.0
    %756 = vmatmul.mubr.f32.gmra.mrb[0].mxu0 %v680
    %v757 = vpop.f32.mrb[0].mxu0
    %v758 = vadd.f32 0.0, %v757
    %v759 = vpop.f32.mrb[0].mxu0
    %760 = vmatprep.mubr.f32.mxu0 0.0
    %761 = vmatmul.mubr.f32.gmra.mrb[0].mxu0 %v683
    %v762 = vpop.f32.mrb[0].mxu0
    %v763 = vadd.f32 0.0, %v762
    %v764 = vpop.f32.mrb[0].mxu0
    %765 = vmatprep.mubr.f32.mxu0 0.0
    %766 = vmatmul.mubr.f32.gmra.mrb[0].mxu0 %v686
    %v767 = vpop.f32.mrb[0].mxu0
    %v768 = vadd.f32 0.0, %v767
    %v769 = vpop.f32.mrb[0].mxu0
    %770 = vmatprep.mubr.f32.mxu0 0.0
    %771 = vmatmul.mubr.f32.gmra.mrb[0].mxu0 %v689
    %v772 = vpop.f32.mrb[0].mxu0
    %v773 = vadd.f32 0.0, %v772
    %v774 = vpop.f32.mrb[0].mxu0
    %775 = vdwg.mxu0
    %v777 = vsel %vm65, %v655, 0
    %v780 = vsel %vm65, %v656, 0
    %v783 = vsel %vm65, %v657, 0
    %v786 = vsel %vm65, %v658, 0
    %788 = vmatprep.subr.mxu0 0.0
    %789 = vmatpush1.msra.mxu0 %v659
    %790 = vmatprep.subr.mxu0 0.0
    %791 = vmatpush1.msra.mxu0 %v660
    %792 = vmatprep.subr.mxu0 0.0
    %793 = vmatpush1.msra.mxu0 %v661
    %794 = vmatprep.subr.mxu0 0.0
    %795 = vmatpush1.msra.mxu0 %v662
    %796 = vmatprep.subr.mxu0 0.0
    %797 = vmatpush1.msra.mxu0 %v663
    %798 = vmatprep.subr.mxu0 0.0
    %799 = vmatpush1.msra.mxu0 %v664
    %800 = vmatprep.subr.mxu0 0.0
    %801 = vmatpush1.msra.mxu0 %v665
    %802 = vmatprep.subr.mxu0 0.0
    %803 = vmatpush1.msra.mxu0 %v666
    %804 = vmatprep.subr.mxu0 0.0
    %805 = vmatpush1.msra.mxu0 0.0
    %806 = vmatprep.subr.mxu0 0.0
    %807 = vmatpush1.msra.mxu0 0.0
    %808 = vmatprep.subr.mxu0 0.0
    %809 = vmatpush1.msra.mxu0 0.0
    %810 = vmatprep.subr.mxu0 0.0
    %811 = vmatpush1.msra.mxu0 0.0
    %812 = vmatprep.subr.mxu0 0.0
    %813 = vmatpush1.msra.mxu0 0.0
    %814 = vmatprep.subr.mxu0 0.0
    %815 = vmatpush1.msra.mxu0 0.0
    %816 = vmatprep.subr.mxu0 0.0
    %817 = vmatpush1.msra.mxu0 0.0
    %818 = vmatprep.subr.mxu0 0.0
    %819 = vmatpush1.msra.mxu0 0.0
    %820 = vmatprep.subr.mxu0 0.0
    %821 = vmatpush1.msra.mxu0 0.0
    %822 = vmatprep.subr.mxu0 0.0
    %823 = vmatpush1.msra.mxu0 0.0
    %824 = vmatprep.subr.mxu0 0.0
    %825 = vmatpush1.msra.mxu0 0.0
    %826 = vmatprep.subr.mxu0 0.0
    %827 = vmatpush1.msra.mxu0 0.0
    %828 = vmatprep.subr.mxu0 0.0
    %829 = vmatpush1.msra.mxu0 0.0
    %830 = vmatprep.subr.mxu0 0.0
    %831 = vmatpush1.msra.mxu0 0.0
    %832 = vmatprep.subr.mxu0 0.0
    %833 = vmatpush1.msra.mxu0 0.0
    %834 = vmatprep.subr.mxu0 0.0
    %835 = vmatpush1.msra.mxu0 0.0
    %836 = vmatprep.subr.mxu0 0.0
    %837 = vmatpush1.msra.mxu0 0.0
    %838 = vmatprep.subr.mxu0 0.0
    %839 = vmatpush1.msra.mxu0 0.0
    %840 = vmatprep.subr.mxu0 0.0
    %841 = vmatpush1.msra.mxu0 0.0
    %842 = vmatprep.subr.mxu0 0.0
    %843 = vmatpush1.msra.mxu0 0.0
    %844 = vmatprep.subr.mxu0 0.0
    %845 = vmatpush1.msra.mxu0 0.0
    %846 = vmatprep.subr.mxu0 0.0
    %847 = vmatpush1.msra.mxu0 0.0
    %848 = vmatprep.subr.mxu0 0.0
    %849 = vmatpush1.msra.mxu0 0.0
    %850 = vmatprep.subr.mxu0 0.0
    %851 = vmatpush1.msra.mxu0 0.0
    %852 = vmatprep.mubr.f32.mxu0 0.0
    %853 = vmatmul.mubr.f32.gmra.mrb[0].mxu0 %v777
    %v854 = vpop.f32.mrb[0].mxu0
    %v855 = vadd.f32 %v758, %v854
    %v856 = vpop.f32.mrb[0].mxu0
    %857 = vmatprep.mubr.f32.mxu0 0.0
    %858 = vmatmul.mubr.f32.gmra.mrb[0].mxu0 %v780
    %v859 = vpop.f32.mrb[0].mxu0
    %v860 = vadd.f32 %v763, %v859
    %v861 = vpop.f32.mrb[0].mxu0
    %862 = vmatprep.mubr.f32.mxu0 0.0
    %863 = vmatmul.mubr.f32.gmra.mrb[0].mxu0 %v783
    %v864 = vpop.f32.mrb[0].mxu0
    %v865 = vadd.f32 %v768, %v864
    %v866 = vpop.f32.mrb[0].mxu0
    %867 = vmatprep.mubr.f32.mxu0 0.0
    %868 = vmatmul.mubr.f32.gmra.mrb[0].mxu0 %v786
    %v869 = vpop.f32.mrb[0].mxu0
    %v870 = vadd.f32 %v773, %v869
    %v871 = vpop.f32.mrb[0].mxu0
    %872 = vdwg.mxu0
    %v873 = vld [vmem:[#allocation2 + $0x2] sm:$0xff]
    %v874 = vld [vmem:[#allocation2 + $0xa] sm:$0xff]
    %v875 = vld [vmem:[#allocation2 + $0x1a] sm:$0xff]
    %v876 = vld [vmem:[#allocation2 + $0x22] sm:$0xff]
    %v877 = vld [vmem:[%s315] sm:$0xff]
    %v878 = vld [vmem:[%s315 + $0x8] sm:$0xff]
    %v879 = vld [vmem:[%s315 + $0x10] sm:$0xff]
    %v880 = vld [vmem:[%s315 + $0x18] sm:$0xff]
    %v881 = vld [vmem:[%s315 + $0x20] sm:$0xff]
    %v882 = vld [vmem:[%s315 + $0x28] sm:$0xff]
    %v883 = vld [vmem:[%s315 + $0x30] sm:$0xff]
    %v884 = vld [vmem:[%s315 + $0x38] sm:$0xff]
    %v886 = vsel %vm65, %v873, 0
    %v889 = vsel %vm65, %v874, 0
    %v892 = vsel %vm65, %v875, 0
    %v895 = vsel %vm65, %v876, 0
    %897 = vmatprep.subr.mxu0 0.0
    %898 = vmatpush1.msra.mxu0 %v877
    %899 = vmatprep.subr.mxu0 0.0
    %900 = vmatpush1.msra.mxu0 %v878
    %901 = vmatprep.subr.mxu0 0.0
    %902 = vmatpush1.msra.mxu0 %v879
    %903 = vmatprep.subr.mxu0 0.0
    %904 = vmatpush1.msra.mxu0 %v880
    %905 = vmatprep.subr.mxu0 0.0
    %906 = vmatpush1.msra.mxu0 %v881
    %907 = vmatprep.subr.mxu0 0.0
    %908 = vmatpush1.msra.mxu0 %v882
    %909 = vmatprep.subr.mxu0 0.0
    %910 = vmatpush1.msra.mxu0 %v883
    %911 = vmatprep.subr.mxu0 0.0
    %912 = vmatpush1.msra.mxu0 %v884
    %913 = vmatprep.subr.mxu0 0.0
    %914 = vmatpush1.msra.mxu0 0.0
    %915 = vmatprep.subr.mxu0 0.0
    %916 = vmatpush1.msra.mxu0 0.0
    %917 = vmatprep.subr.mxu0 0.0
    %918 = vmatpush1.msra.mxu0 0.0
    %919 = vmatprep.subr.mxu0 0.0
    %920 = vmatpush1.msra.mxu0 0.0
    %921 = vmatprep.subr.mxu0 0.0
    %922 = vmatpush1.msra.mxu0 0.0
    %923 = vmatprep.subr.mxu0 0.0
    %924 = vmatpush1.msra.mxu0 0.0
    %925 = vmatprep.subr.mxu0 0.0
    %926 = vmatpush1.msra.mxu0 0.0
    %927 = vmatprep.subr.mxu0 0.0
    %928 = vmatpush1.msra.mxu0 0.0
    %929 = vmatprep.subr.mxu0 0.0
    %930 = vmatpush1.msra.mxu0 0.0
    %931 = vmatprep.subr.mxu0 0.0
    %932 = vmatpush1.msra.mxu0 0.0
    %933 = vmatprep.subr.mxu0 0.0
    %934 = vmatpush1.msra.mxu0 0.0
    %935 = vmatprep.subr.mxu0 0.0
    %936 = vmatpush1.msra.mxu0 0.0
    %937 = vmatprep.subr.mxu0 0.0
    %938 = vmatpush1.msra.mxu0 0.0
    %939 = vmatprep.subr.mxu0 0.0
    %940 = vmatpush1.msra.mxu0 0.0
    %941 = vmatprep.subr.mxu0 0.0
    %942 = vmatpush1.msra.mxu0 0.0
    %943 = vmatprep.subr.mxu0 0.0
    %944 = vmatpush1.msra.mxu0 0.0
    %945 = vmatprep.subr.mxu0 0.0
    %946 = vmatpush1.msra.mxu0 0.0
    %947 = vmatprep.subr.mxu0 0.0
    %948 = vmatpush1.msra.mxu0 0.0
    %949 = vmatprep.subr.mxu0 0.0
    %950 = vmatpush1.msra.mxu0 0.0
    %951 = vmatprep.subr.mxu0 0.0
    %952 = vmatpush1.msra.mxu0 0.0
    %953 = vmatprep.subr.mxu0 0.0
    %954 = vmatpush1.msra.mxu0 0.0
    %955 = vmatprep.subr.mxu0 0.0
    %956 = vmatpush1.msra.mxu0 0.0
    %957 = vmatprep.subr.mxu0 0.0
    %958 = vmatpush1.msra.mxu0 0.0
    %959 = vmatprep.subr.mxu0 0.0
    %960 = vmatpush1.msra.mxu0 0.0
    %961 = vmatprep.mubr.f32.mxu0 0.0
    %962 = vmatmul.mubr.f32.gmra.mrb[0].mxu0 %v886
    %v963 = vpop.f32.mrb[0].mxu0
    %v964 = vadd.f32 0.0, %v963
    %v965 = vpop.f32.mrb[0].mxu0
    %966 = vmatprep.mubr.f32.mxu0 0.0
    %967 = vmatmul.mubr.f32.gmra.mrb[0].mxu0 %v889
    %v968 = vpop.f32.mrb[0].mxu0
    %v969 = vadd.f32 0.0, %v968
    %v970 = vpop.f32.mrb[0].mxu0
    %971 = vmatprep.mubr.f32.mxu0 0.0
    %972 = vmatmul.mubr.f32.gmra.mrb[0].mxu0 %v892
    %v973 = vpop.f32.mrb[0].mxu0
    %v974 = vadd.f32 0.0, %v973
    %v975 = vpop.f32.mrb[0].mxu0
    %976 = vmatprep.mubr.f32.mxu0 0.0
    %977 = vmatmul.mubr.f32.gmra.mrb[0].mxu0 %v895
    %v978 = vpop.f32.mrb[0].mxu0
    %v979 = vadd.f32 0.0, %v978
    %v980 = vpop.f32.mrb[0].mxu0
    %981 = vdwg.mxu0
    %v982 = vadd.f32 %v855, %v964
    %v983 = vadd.f32 %v860, %v969
    %v984 = vadd.f32 %v865, %v974
    %v985 = vadd.f32 %v870, %v979
    %v986 = vadd.f32 %v982, %v429
    %v987 = vadd.f32 %v983, %v429
    %v988 = vadd.f32 %v984, %v429
    %v989 = vadd.f32 %v985, %v429
    %v990 = vsel %vm65, %v986, 0.0
    %v991 = vsel %vm65, %v987, 0.0
    %v992 = vadd.f32 %v990, %v991
    %v993 = vsel %vm65, %v988, 0.0
    %v994 = vadd.f32 %v992, %v993
    %v995 = vsel %vm65, %v989, 0.0
    %v996 = vadd.f32 %v994, %v995
    %v997 = vrot.slane %v996, 4
    %v998 = vadd.f32 %v996, %v997
    %v999 = vrot.slane %v998, 2
    %v1000 = vadd.f32 %v998, %v999
    %v1001 = vrot.slane %v1000, 1
    %v1002 = vadd.f32 %v1000, %v1001
    %v1003 = vmul.f32 %v1002, 0.03125
    %v1005 = vsel %vm65, %v1003, 0
    %1007 = vmatprep.subr.mxu0 0.0
    %1008 = vmatpush1.msra.mxu0 %v80
    %1009 = vmatprep.subr.mxu0 0.0
    %1010 = vmatpush1.msra.mxu0 %v81
    %1011 = vmatprep.subr.mxu0 0.0
    %1012 = vmatpush1.msra.mxu0 %v82
    %1013 = vmatprep.subr.mxu0 0.0
    %1014 = vmatpush1.msra.mxu0 %v83
    %1015 = vmatprep.subr.mxu0 0.0
    %1016 = vmatpush1.msra.mxu0 %v84
    %1017 = vmatprep.subr.mxu0 0.0
    %1018 = vmatpush1.msra.mxu0 %v85
    %1019 = vmatprep.subr.mxu0 0.0
    %1020 = vmatpush1.msra.mxu0 %v86
    %1021 = vmatprep.subr.mxu0 0.0
    %1022 = vmatpush1.msra.mxu0 %v87
    %1023 = vmatprep.subr.mxu0 0.0
    %1024 = vmatpush1.msra.mxu0 0.0
    %1025 = vmatprep.subr.mxu0 0.0
    %1026 = vmatpush1.msra.mxu0 0.0
    %1027 = vmatprep.subr.mxu0 0.0
    %1028 = vmatpush1.msra.mxu0 0.0
    %1029 = vmatprep.subr.mxu0 0.0
    %1030 = vmatpush1.msra.mxu0 0.0
    %1031 = vmatprep.subr.mxu0 0.0
    %1032 = vmatpush1.msra.mxu0 0.0
    %1033 = vmatprep.subr.mxu0 0.0
    %1034 = vmatpush1.msra.mxu0 0.0
    %1035 = vmatprep.subr.mxu0 0.0
    %1036 = vmatpush1.msra.mxu0 0.0
    %1037 = vmatprep.subr.mxu0 0.0
    %1038 = vmatpush1.msra.mxu0 0.0
    %1039 = vmatprep.subr.mxu0 0.0
    %1040 = vmatpush1.msra.mxu0 0.0
    %1041 = vmatprep.subr.mxu0 0.0
    %1042 = vmatpush1.msra.mxu0 0.0
    %1043 = vmatprep.subr.mxu0 0.0
    %1044 = vmatpush1.msra.mxu0 0.0
    %1045 = vmatprep.subr.mxu0 0.0
    %1046 = vmatpush1.msra.mxu0 0.0
    %1047 = vmatprep.subr.mxu0 0.0
    %1048 = vmatpush1.msra.mxu0 0.0
    %1049 = vmatprep.subr.mxu0 0.0
    %1050 = vmatpush1.msra.mxu0 0.0
    %1051 = vmatprep.subr.mxu0 0.0
    %1052 = vmatpush1.msra.mxu0 0.0
    %1053 = vmatprep.subr.mxu0 0.0
    %1054 = vmatpush1.msra.mxu0 0.0
    %1055 = vmatprep.subr.mxu0 0.0
    %1056 = vmatpush1.msra.mxu0 0.0
    %1057 = vmatprep.subr.mxu0 0.0
    %1058 = vmatpush1.msra.mxu0 0.0
    %1059 = vmatprep.subr.mxu0 0.0
    %1060 = vmatpush1.msra.mxu0 0.0
    %1061 = vmatprep.subr.mxu0 0.0
    %1062 = vmatpush1.msra.mxu0 0.0
    %1063 = vmatprep.subr.mxu0 0.0
    %1064 = vmatpush1.msra.mxu0 0.0
    %1065 = vmatprep.subr.mxu0 0.0
    %1066 = vmatpush1.msra.mxu0 0.0
    %1067 = vmatprep.subr.mxu0 0.0
    %1068 = vmatpush1.msra.mxu0 0.0
    %1069 = vmatprep.subr.mxu0 0.0
    %1070 = vmatpush1.msra.mxu0 0.0
    %1071 = vmatprep.mubr.f32.mxu0 0.0
    %1072 = vmatmul.mubr.f32.gmra.mrb[0].mxu0 %v1005
    %v1073 = vpop.f32.mrb[0].mxu0
    %v1074 = vadd.f32 0.0, %v1073
    %v1075 = vpop.f32.mrb[0].mxu0
    %1076 = vdwg.mxu0
    %v1077 = vlaneseq
    %v1078 = vshrl.u32 %v1077, 7
    %v1079 = vsub.s32 0, %v1078
    %v1080 = vrot.slane %v1074, %v1079
    %v1081 = vsub.f32 %v986, %v1080
    %v1082 = vsub.f32 %v987, %v1080
    %v1083 = vsub.f32 %v988, %v1080
    %v1084 = vsub.f32 %v989, %v1080
    %v1085 = vmul.f32 %v1081, %v1081
    %v1086 = vmul.f32 %v1082, %v1082
    %v1087 = vmul.f32 %v1083, %v1083
    %v1088 = vmul.f32 %v1084, %v1084
    %v1089 = vsel %vm65, %v1085, 0.0
    %v1090 = vsel %vm65, %v1086, 0.0
    %v1091 = vadd.f32 %v1089, %v1090
    %v1092 = vsel %vm65, %v1087, 0.0
    %v1093 = vadd.f32 %v1091, %v1092
    %v1094 = vsel %vm65, %v1088, 0.0
    %v1095 = vadd.f32 %v1093, %v1094
    %v1096 = vrot.slane %v1095, 4
    %v1097 = vadd.f32 %v1095, %v1096
    %v1098 = vrot.slane %v1097, 2
    %v1099 = vadd.f32 %v1097, %v1098
    %v1100 = vrot.slane %v1099, 1
    %v1101 = vadd.f32 %v1099, %v1100
    %v1102 = vmul.f32 %v1101, 0.03125
    %v1104 = vsel %vm65, %v1102, 0
    %1106 = vmatprep.subr.mxu0 0.0
    %1107 = vmatpush1.msra.mxu0 %v80
    %1108 = vmatprep.subr.mxu0 0.0
    %1109 = vmatpush1.msra.mxu0 %v81
    %1110 = vmatprep.subr.mxu0 0.0
    %1111 = vmatpush1.msra.mxu0 %v82
    %1112 = vmatprep.subr.mxu0 0.0
    %1113 = vmatpush1.msra.mxu0 %v83
    %1114 = vmatprep.subr.mxu0 0.0
    %1115 = vmatpush1.msra.mxu0 %v84
    %1116 = vmatprep.subr.mxu0 0.0
    %1117 = vmatpush1.msra.mxu0 %v85
    %1118 = vmatprep.subr.mxu0 0.0
    %1119 = vmatpush1.msra.mxu0 %v86
    %1120 = vmatprep.subr.mxu0 0.0
    %1121 = vmatpush1.msra.mxu0 %v87
    %1122 = vmatprep.subr.mxu0 0.0
    %1123 = vmatpush1.msra.mxu0 0.0
    %1124 = vmatprep.subr.mxu0 0.0
    %1125 = vmatpush1.msra.mxu0 0.0
    %1126 = vmatprep.subr.mxu0 0.0
    %1127 = vmatpush1.msra.mxu0 0.0
    %1128 = vmatprep.subr.mxu0 0.0
    %1129 = vmatpush1.msra.mxu0 0.0
    %1130 = vmatprep.subr.mxu0 0.0
    %1131 = vmatpush1.msra.mxu0 0.0
    %1132 = vmatprep.subr.mxu0 0.0
    %1133 = vmatpush1.msra.mxu0 0.0
    %1134 = vmatprep.subr.mxu0 0.0
    %1135 = vmatpush1.msra.mxu0 0.0
    %1136 = vmatprep.subr.mxu0 0.0
    %1137 = vmatpush1.msra.mxu0 0.0
    %1138 = vmatprep.subr.mxu0 0.0
    %1139 = vmatpush1.msra.mxu0 0.0
    %1140 = vmatprep.subr.mxu0 0.0
    %1141 = vmatpush1.msra.mxu0 0.0
    %1142 = vmatprep.subr.mxu0 0.0
    %1143 = vmatpush1.msra.mxu0 0.0
    %1144 = vmatprep.subr.mxu0 0.0
    %1145 = vmatpush1.msra.mxu0 0.0
    %1146 = vmatprep.subr.mxu0 0.0
    %1147 = vmatpush1.msra.mxu0 0.0
    %1148 = vmatprep.subr.mxu0 0.0
    %1149 = vmatpush1.msra.mxu0 0.0
    %1150 = vmatprep.subr.mxu0 0.0
    %1151 = vmatpush1.msra.mxu0 0.0
    %1152 = vmatprep.subr.mxu0 0.0
    %1153 = vmatpush1.msra.mxu0 0.0
    %1154 = vmatprep.subr.mxu0 0.0
    %1155 = vmatpush1.msra.mxu0 0.0
    %1156 = vmatprep.subr.mxu0 0.0
    %1157 = vmatpush1.msra.mxu0 0.0
    %1158 = vmatprep.subr.mxu0 0.0
    %1159 = vmatpush1.msra.mxu0 0.0
    %1160 = vmatprep.subr.mxu0 0.0
    %1161 = vmatpush1.msra.mxu0 0.0
    %1162 = vmatprep.subr.mxu0 0.0
    %1163 = vmatpush1.msra.mxu0 0.0
    %1164 = vmatprep.subr.mxu0 0.0
    %1165 = vmatpush1.msra.mxu0 0.0
    %1166 = vmatprep.subr.mxu0 0.0
    %1167 = vmatpush1.msra.mxu0 0.0
    %1168 = vmatprep.subr.mxu0 0.0
    %1169 = vmatpush1.msra.mxu0 0.0
    %1170 = vmatprep.mubr.f32.mxu0 0.0
    %1171 = vmatmul.mubr.f32.gmra.mrb[0].mxu0 %v1104
    %v1172 = vpop.f32.mrb[0].mxu0
    %v1173 = vadd.f32 1e-05, %v1172
    %v1174 = vpop.f32.mrb[0].mxu0
    %1175 = vdwg.mxu0
    %v1176 = vrsqrt.pop %v1173
    %v1177 = vmul.f32 %v78, %v1176
    %v1179 = vlaneseq
    %v1180 = vshrl.u32 %v1179, 7
    %v1181 = vsub.s32 0, %v1180
    %v1182 = vrot.slane %v1177, %v1181
    %v1184 = vmul.f32 %v1081, %v1182
    %v1185 = vmul.f32 %v1082, %v1182
    %v1186 = vmul.f32 %v1083, %v1182
    %v1187 = vmul.f32 %v1084, %v1182
    %v1188 = vadd.f32 %v1184, %v637
    %v1189 = vadd.f32 %v1185, %v637
    %v1190 = vadd.f32 %v1186, %v637
    %v1191 = vadd.f32 %v1187, %v637
    %v1192 = vmax.f32 %v1188, 0.0
    %v1193 = vmax.f32 %v1189, 0.0
    %v1194 = vmax.f32 %v1190, 0.0
    %v1195 = vmax.f32 %v1191, 0.0
    %v1196 = vadd.f32 %v73, %v1192
    %v1197 = vadd.f32 %v74, %v1193
    %v1198 = vadd.f32 %v75, %v1194
    %v1199 = vadd.f32 %v76, %v1195
    %1200 = vst.msk [vmem:[#allocation2 + $0x1] sm:$0xff] %vm65, %v1196
    %1201 = vst.msk [vmem:[#allocation2 + $0x9] sm:$0xff] %vm65, %v1197
    %1202 = vst.msk [vmem:[#allocation2 + $0x19] sm:$0xff] %vm65, %v1198
    %1203 = vst.msk [vmem:[#allocation2 + $0x21] sm:$0xff] %vm65, %v1199
    %v1204 = vld [vmem:[#allocation2] sm:$0xff]
    %v1205 = vld [vmem:[#allocation2 + $0x8] sm:$0xff]
    %v1206 = vld [vmem:[#allocation2 + $0x18] sm:$0xff]
    %v1207 = vld [vmem:[#allocation2 + $0x20] sm:$0xff]
    %v1208 = vld [vmem:[#allocation6] sm:$0xff]
    %v1209 = vld [vmem:[#allocation6 + $0x8] sm:$0xff]
    %v1210 = vld [vmem:[#allocation6 + $0x10] sm:$0xff]
    %v1211 = vld [vmem:[#allocation6 + $0x18] sm:$0xff]
    %v1212 = vld [vmem:[#allocation6 + $0x20] sm:$0xff]
    %v1213 = vld [vmem:[#allocation6 + $0x28] sm:$0xff]
    %v1214 = vld [vmem:[#allocation6 + $0x30] sm:$0xff]
    %v1215 = vld [vmem:[#allocation6 + $0x38] sm:$0xff]
    %v1216 = vld [vmem:[#allocation2 + $0x1] sm:$0xff]
    %v1217 = vld [vmem:[#allocation2 + $0x9] sm:$0xff]
    %v1218 = vld [vmem:[#allocation2 + $0x19] sm:$0xff]
    %v1219 = vld [vmem:[#allocation2 + $0x21] sm:$0xff]
    %v1220 = vld [vmem:[%s108] sm:$0xff]
    %v1221 = vld [vmem:[%s108 + $0x8] sm:$0xff]
    %v1222 = vld [vmem:[%s108 + $0x10] sm:$0xff]
    %v1223 = vld [vmem:[%s108 + $0x18] sm:$0xff]
    %v1224 = vld [vmem:[%s108 + $0x20] sm:$0xff]
    %v1225 = vld [vmem:[%s108 + $0x28] sm:$0xff]
    %v1226 = vld [vmem:[%s108 + $0x30] sm:$0xff]
    %v1227 = vld [vmem:[%s108 + $0x38] sm:$0xff]
    %v1229 = vsel %vm65, %v1216, 0
    %v1232 = vsel %vm65, %v1217, 0
    %v1235 = vsel %vm65, %v1218, 0
    %v1238 = vsel %vm65, %v1219, 0
    %1240 = vmatprep.subr.mxu0 0.0
    %1241 = vmatpush1.msra.mxu0 %v1220
    %1242 = vmatprep.subr.mxu0 0.0
    %1243 = vmatpush1.msra.mxu0 %v1221
    %1244 = vmatprep.subr.mxu0 0.0
    %1245 = vmatpush1.msra.mxu0 %v1222
    %1246 = vmatprep.subr.mxu0 0.0
    %1247 = vmatpush1.msra.mxu0 %v1223
    %1248 = vmatprep.subr.mxu0 0.0
    %1249 = vmatpush1.msra.mxu0 %v1224
    %1250 = vmatprep.subr.mxu0 0.0
    %1251 = vmatpush1.msra.mxu0 %v1225
    %1252 = vmatprep.subr.mxu0 0.0
    %1253 = vmatpush1.msra.mxu0 %v1226
    %1254 = vmatprep.subr.mxu0 0.0
    %1255 = vmatpush1.msra.mxu0 %v1227
    %1256 = vmatprep.subr.mxu0 0.0
    %1257 = vmatpush1.msra.mxu0 0.0
    %1258 = vmatprep.subr.mxu0 0.0
    %1259 = vmatpush1.msra.mxu0 0.0
    %1260 = vmatprep.subr.mxu0 0.0
    %1261 = vmatpush1.msra.mxu0 0.0
    %1262 = vmatprep.subr.mxu0 0.0
    %1263 = vmatpush1.msra.mxu0 0.0
    %1264 = vmatprep.subr.mxu0 0.0
    %1265 = vmatpush1.msra.mxu0 0.0
    %1266 = vmatprep.subr.mxu0 0.0
    %1267 = vmatpush1.msra.mxu0 0.0
    %1268 = vmatprep.subr.mxu0 0.0
    %1269 = vmatpush1.msra.mxu0 0.0
    %1270 = vmatprep.subr.mxu0 0.0
    %1271 = vmatpush1.msra.mxu0 0.0
    %1272 = vmatprep.subr.mxu0 0.0
    %1273 = vmatpush1.msra.mxu0 0.0
    %1274 = vmatprep.subr.mxu0 0.0
    %1275 = vmatpush1.msra.mxu0 0.0
    %1276 = vmatprep.subr.mxu0 0.0
    %1277 = vmatpush1.msra.mxu0 0.0
    %1278 = vmatprep.subr.mxu0 0.0
    %1279 = vmatpush1.msra.mxu0 0.0
    %1280 = vmatprep.subr.mxu0 0.0
    %1281 = vmatpush1.msra.mxu0 0.0
    %1282 = vmatprep.subr.mxu0 0.0
    %1283 = vmatpush1.msra.mxu0 0.0
    %1284 = vmatprep.subr.mxu0 0.0
    %1285 = vmatpush1.msra.mxu0 0.0
    %1286 = vmatprep.subr.mxu0 0.0
    %1287 = vmatpush1.msra.mxu0 0.0
    %1288 = vmatprep.subr.mxu0 0.0
    %1289 = vmatpush1.msra.mxu0 0.0
    %1290 = vmatprep.subr.mxu0 0.0
    %1291 = vmatpush1.msra.mxu0 0.0
    %1292 = vmatprep.subr.mxu0 0.0
    %1293 = vmatpush1.msra.mxu0 0.0
    %1294 = vmatprep.subr.mxu0 0.0
    %1295 = vmatpush1.msra.mxu0 0.0
    %1296 = vmatprep.subr.mxu0 0.0
    %1297 = vmatpush1.msra.mxu0 0.0
    %1298 = vmatprep.subr.mxu0 0.0
    %1299 = vmatpush1.msra.mxu0 0.0
    %1300 = vmatprep.subr.mxu0 0.0
    %1301 = vmatpush1.msra.mxu0 0.0
    %1302 = vmatprep.subr.mxu0 0.0
    %1303 = vmatpush1.msra.mxu0 0.0
    %1304 = vmatprep.mubr.f32.mxu0 0.0
    %1305 = vmatmul.mubr.f32.gmra.mrb[0].mxu0 %v1229
    %v1306 = vpop.f32.mrb[0].mxu0
    %v1307 = vadd.f32 0.0, %v1306
    %v1308 = vpop.f32.mrb[0].mxu0
    %1309 = vmatprep.mubr.f32.mxu0 0.0
    %1310 = vmatmul.mubr.f32.gmra.mrb[0].mxu0 %v1232
    %v1311 = vpop.f32.mrb[0].mxu0
    %v1312 = vadd.f32 0.0, %v1311
    %v1313 = vpop.f32.mrb[0].mxu0
    %1314 = vmatprep.mubr.f32.mxu0 0.0
    %1315 = vmatmul.mubr.f32.gmra.mrb[0].mxu0 %v1235
    %v1316 = vpop.f32.mrb[0].mxu0
    %v1317 = vadd.f32 0.0, %v1316
    %v1318 = vpop.f32.mrb[0].mxu0
    %1319 = vmatprep.mubr.f32.mxu0 0.0
    %1320 = vmatmul.mubr.f32.gmra.mrb[0].mxu0 %v1238
    %v1321 = vpop.f32.mrb[0].mxu0
    %v1322 = vadd.f32 0.0, %v1321
    %v1323 = vpop.f32.mrb[0].mxu0
    %1324 = vdwg.mxu0
    %v1326 = vsel %vm65, %v1204, 0
    %v1329 = vsel %vm65, %v1205, 0
    %v1332 = vsel %vm65, %v1206, 0
    %v1335 = vsel %vm65, %v1207, 0
    %1337 = vmatprep.subr.mxu0 0.0
    %1338 = vmatpush1.msra.mxu0 %v1208
    %1339 = vmatprep.subr.mxu0 0.0
    %1340 = vmatpush1.msra.mxu0 %v1209
    %1341 = vmatprep.subr.mxu0 0.0
    %1342 = vmatpush1.msra.mxu0 %v1210
    %1343 = vmatprep.subr.mxu0 0.0
    %1344 = vmatpush1.msra.mxu0 %v1211
    %1345 = vmatprep.subr.mxu0 0.0
    %1346 = vmatpush1.msra.mxu0 %v1212
    %1347 = vmatprep.subr.mxu0 0.0
    %1348 = vmatpush1.msra.mxu0 %v1213
    %1349 = vmatprep.subr.mxu0 0.0
    %1350 = vmatpush1.msra.mxu0 %v1214
    %1351 = vmatprep.subr.mxu0 0.0
    %1352 = vmatpush1.msra.mxu0 %v1215
    %1353 = vmatprep.subr.mxu0 0.0
    %1354 = vmatpush1.msra.mxu0 0.0
    %1355 = vmatprep.subr.mxu0 0.0
    %1356 = vmatpush1.msra.mxu0 0.0
    %1357 = vmatprep.subr.mxu0 0.0
    %1358 = vmatpush1.msra.mxu0 0.0
    %1359 = vmatprep.subr.mxu0 0.0
    %1360 = vmatpush1.msra.mxu0 0.0
    %1361 = vmatprep.subr.mxu0 0.0
    %1362 = vmatpush1.msra.mxu0 0.0
    %1363 = vmatprep.subr.mxu0 0.0
    %1364 = vmatpush1.msra.mxu0 0.0
    %1365 = vmatprep.subr.mxu0 0.0
    %1366 = vmatpush1.msra.mxu0 0.0
    %1367 = vmatprep.subr.mxu0 0.0
    %1368 = vmatpush1.msra.mxu0 0.0
    %1369 = vmatprep.subr.mxu0 0.0
    %1370 = vmatpush1.msra.mxu0 0.0
    %1371 = vmatprep.subr.mxu0 0.0
    %1372 = vmatpush1.msra.mxu0 0.0
    %1373 = vmatprep.subr.mxu0 0.0
    %1374 = vmatpush1.msra.mxu0 0.0
    %1375 = vmatprep.subr.mxu0 0.0
    %1376 = vmatpush1.msra.mxu0 0.0
    %1377 = vmatprep.subr.mxu0 0.0
    %1378 = vmatpush1.msra.mxu0 0.0
    %1379 = vmatprep.subr.mxu0 0.0
    %1380 = vmatpush1.msra.mxu0 0.0
    %1381 = vmatprep.subr.mxu0 0.0
    %1382 = vmatpush1.msra.mxu0 0.0
    %1383 = vmatprep.subr.mxu0 0.0
    %1384 = vmatpush1.msra.mxu0 0.0
    %1385 = vmatprep.subr.mxu0 0.0
    %1386 = vmatpush1.msra.mxu0 0.0
    %1387 = vmatprep.subr.mxu0 0.0
    %1388 = vmatpush1.msra.mxu0 0.0
    %1389 = vmatprep.subr.mxu0 0.0
    %1390 = vmatpush1.msra.mxu0 0.0
    %1391 = vmatprep.subr.mxu0 0.0
    %1392 = vmatpush1.msra.mxu0 0.0
    %1393 = vmatprep.subr.mxu0 0.0
    %1394 = vmatpush1.msra.mxu0 0.0
    %1395 = vmatprep.subr.mxu0 0.0
    %1396 = vmatpush1.msra.mxu0 0.0
    %1397 = vmatprep.subr.mxu0 0.0
    %1398 = vmatpush1.msra.mxu0 0.0
    %1399 = vmatprep.subr.mxu0 0.0
    %1400 = vmatpush1.msra.mxu0 0.0
    %1401 = vmatprep.mubr.f32.mxu0 0.0
    %1402 = vmatmul.mubr.f32.gmra.mrb[0].mxu0 %v1326
    %v1403 = vpop.f32.mrb[0].mxu0
    %v1404 = vadd.f32 %v1307, %v1403
    %v1405 = vpop.f32.mrb[0].mxu0
    %1406 = vmatprep.mubr.f32.mxu0 0.0
    %1407 = vmatmul.mubr.f32.gmra.mrb[0].mxu0 %v1329
    %v1408 = vpop.f32.mrb[0].mxu0
    %v1409 = vadd.f32 %v1312, %v1408
    %v1410 = vpop.f32.mrb[0].mxu0
    %1411 = vmatprep.mubr.f32.mxu0 0.0
    %1412 = vmatmul.mubr.f32.gmra.mrb[0].mxu0 %v1332
    %v1413 = vpop.f32.mrb[0].mxu0
    %v1414 = vadd.f32 %v1317, %v1413
    %v1415 = vpop.f32.mrb[0].mxu0
    %1416 = vmatprep.mubr.f32.mxu0 0.0
    %1417 = vmatmul.mubr.f32.gmra.mrb[0].mxu0 %v1335
    %v1418 = vpop.f32.mrb[0].mxu0
    %v1419 = vadd.f32 %v1322, %v1418
    %v1420 = vpop.f32.mrb[0].mxu0
    %1421 = vdwg.mxu0
    %v1422 = vld [vmem:[#allocation2 + $0x2] sm:$0xff]
    %v1423 = vld [vmem:[#allocation2 + $0xa] sm:$0xff]
    %v1424 = vld [vmem:[#allocation2 + $0x1a] sm:$0xff]
    %v1425 = vld [vmem:[#allocation2 + $0x22] sm:$0xff]
    %v1426 = vld [vmem:[%s315] sm:$0xff]
    %v1427 = vld [vmem:[%s315 + $0x8] sm:$0xff]
    %v1428 = vld [vmem:[%s315 + $0x10] sm:$0xff]
    %v1429 = vld [vmem:[%s315 + $0x18] sm:$0xff]
    %v1430 = vld [vmem:[%s315 + $0x20] sm:$0xff]
    %v1431 = vld [vmem:[%s315 + $0x28] sm:$0xff]
    %v1432 = vld [vmem:[%s315 + $0x30] sm:$0xff]
    %v1433 = vld [vmem:[%s315 + $0x38] sm:$0xff]
    %v1435 = vsel %vm65, %v1422, 0
    %v1438 = vsel %vm65, %v1423, 0
    %v1441 = vsel %vm65, %v1424, 0
    %v1444 = vsel %vm65, %v1425, 0
    %1446 = vmatprep.subr.mxu0 0.0
    %1447 = vmatpush1.msra.mxu0 %v1426
    %1448 = vmatprep.subr.mxu0 0.0
    %1449 = vmatpush1.msra.mxu0 %v1427
    %1450 = vmatprep.subr.mxu0 0.0
    %1451 = vmatpush1.msra.mxu0 %v1428
    %1452 = vmatprep.subr.mxu0 0.0
    %1453 = vmatpush1.msra.mxu0 %v1429
    %1454 = vmatprep.subr.mxu0 0.0
    %1455 = vmatpush1.msra.mxu0 %v1430
    %1456 = vmatprep.subr.mxu0 0.0
    %1457 = vmatpush1.msra.mxu0 %v1431
    %1458 = vmatprep.subr.mxu0 0.0
    %1459 = vmatpush1.msra.mxu0 %v1432
    %1460 = vmatprep.subr.mxu0 0.0
    %1461 = vmatpush1.msra.mxu0 %v1433
    %1462 = vmatprep.subr.mxu0 0.0
    %1463 = vmatpush1.msra.mxu0 0.0
    %1464 = vmatprep.subr.mxu0 0.0
    %1465 = vmatpush1.msra.mxu0 0.0
    %1466 = vmatprep.subr.mxu0 0.0
    %1467 = vmatpush1.msra.mxu0 0.0
    %1468 = vmatprep.subr.mxu0 0.0
    %1469 = vmatpush1.msra.mxu0 0.0
    %1470 = vmatprep.subr.mxu0 0.0
    %1471 = vmatpush1.msra.mxu0 0.0
    %1472 = vmatprep.subr.mxu0 0.0
    %1473 = vmatpush1.msra.mxu0 0.0
    %1474 = vmatprep.subr.mxu0 0.0
    %1475 = vmatpush1.msra.mxu0 0.0
    %1476 = vmatprep.subr.mxu0 0.0
    %1477 = vmatpush1.msra.mxu0 0.0
    %1478 = vmatprep.subr.mxu0 0.0
    %1479 = vmatpush1.msra.mxu0 0.0
    %1480 = vmatprep.subr.mxu0 0.0
    %1481 = vmatpush1.msra.mxu0 0.0
    %1482 = vmatprep.subr.mxu0 0.0
    %1483 = vmatpush1.msra.mxu0 0.0
    %1484 = vmatprep.subr.mxu0 0.0
    %1485 = vmatpush1.msra.mxu0 0.0
    %1486 = vmatprep.subr.mxu0 0.0
    %1487 = vmatpush1.msra.mxu0 0.0
    %1488 = vmatprep.subr.mxu0 0.0
    %1489 = vmatpush1.msra.mxu0 0.0
    %1490 = vmatprep.subr.mxu0 0.0
    %1491 = vmatpush1.msra.mxu0 0.0
    %1492 = vmatprep.subr.mxu0 0.0
    %1493 = vmatpush1.msra.mxu0 0.0
    %1494 = vmatprep.subr.mxu0 0.0
    %1495 = vmatpush1.msra.mxu0 0.0
    %1496 = vmatprep.subr.mxu0 0.0
    %1497 = vmatpush1.msra.mxu0 0.0
    %1498 = vmatprep.subr.mxu0 0.0
    %1499 = vmatpush1.msra.mxu0 0.0
    %1500 = vmatprep.subr.mxu0 0.0
    %1501 = vmatpush1.msra.mxu0 0.0
    %1502 = vmatprep.subr.mxu0 0.0
    %1503 = vmatpush1.msra.mxu0 0.0
    %1504 = vmatprep.subr.mxu0 0.0
    %1505 = vmatpush1.msra.mxu0 0.0
    %1506 = vmatprep.subr.mxu0 0.0
    %1507 = vmatpush1.msra.mxu0 0.0
    %1508 = vmatprep.subr.mxu0 0.0
    %1509 = vmatpush1.msra.mxu0 0.0
    %1510 = vmatprep.mubr.f32.mxu0 0.0
    %1511 = vmatmul.mubr.f32.gmra.mrb[0].mxu0 %v1435
    %v1512 = vpop.f32.mrb[0].mxu0
    %v1513 = vadd.f32 0.0, %v1512
    %v1514 = vpop.f32.mrb[0].mxu0
    %1515 = vmatprep.mubr.f32.mxu0 0.0
    %1516 = vmatmul.mubr.f32.gmra.mrb[0].mxu0 %v1438
    %v1517 = vpop.f32.mrb[0].mxu0
    %v1518 = vadd.f32 0.0, %v1517
    %v1519 = vpop.f32.mrb[0].mxu0
    %1520 = vmatprep.mubr.f32.mxu0 0.0
    %1521 = vmatmul.mubr.f32.gmra.mrb[0].mxu0 %v1441
    %v1522 = vpop.f32.mrb[0].mxu0
    %v1523 = vadd.f32 0.0, %v1522
    %v1524 = vpop.f32.mrb[0].mxu0
    %1525 = vmatprep.mubr.f32.mxu0 0.0
    %1526 = vmatmul.mubr.f32.gmra.mrb[0].mxu0 %v1444
    %v1527 = vpop.f32.mrb[0].mxu0
    %v1528 = vadd.f32 0.0, %v1527
    %v1529 = vpop.f32.mrb[0].mxu0
    %1530 = vdwg.mxu0
    %v1531 = vadd.f32 %v1404, %v1513
    %v1532 = vadd.f32 %v1409, %v1518
    %v1533 = vadd.f32 %v1414, %v1523
    %v1534 = vadd.f32 %v1419, %v1528
    %v1535 = vadd.f32 %v1531, %v429
    %v1536 = vadd.f32 %v1532, %v429
    %v1537 = vadd.f32 %v1533, %v429
    %v1538 = vadd.f32 %v1534, %v429
    %v1539 = vsel %vm65, %v1535, 0.0
    %v1540 = vsel %vm65, %v1536, 0.0
    %v1541 = vadd.f32 %v1539, %v1540
    %v1542 = vsel %vm65, %v1537, 0.0
    %v1543 = vadd.f32 %v1541, %v1542
    %v1544 = vsel %vm65, %v1538, 0.0
    %v1545 = vadd.f32 %v1543, %v1544
    %v1546 = vrot.slane %v1545, 4
    %v1547 = vadd.f32 %v1545, %v1546
    %v1548 = vrot.slane %v1547, 2
    %v1549 = vadd.f32 %v1547, %v1548
    %v1550 = vrot.slane %v1549, 1
    %v1551 = vadd.f32 %v1549, %v1550
    %v1552 = vmul.f32 %v1551, 0.03125
    %v1554 = vsel %vm65, %v1552, 0
    %1556 = vmatprep.subr.mxu0 0.0
    %1557 = vmatpush1.msra.mxu0 %v80
    %1558 = vmatprep.subr.mxu0 0.0
    %1559 = vmatpush1.msra.mxu0 %v81
    %1560 = vmatprep.subr.mxu0 0.0
    %1561 = vmatpush1.msra.mxu0 %v82
    %1562 = vmatprep.subr.mxu0 0.0
    %1563 = vmatpush1.msra.mxu0 %v83
    %1564 = vmatprep.subr.mxu0 0.0
    %1565 = vmatpush1.msra.mxu0 %v84
    %1566 = vmatprep.subr.mxu0 0.0
    %1567 = vmatpush1.msra.mxu0 %v85
    %1568 = vmatprep.subr.mxu0 0.0
    %1569 = vmatpush1.msra.mxu0 %v86
    %1570 = vmatprep.subr.mxu0 0.0
    %1571 = vmatpush1.msra.mxu0 %v87
    %1572 = vmatprep.subr.mxu0 0.0
    %1573 = vmatpush1.msra.mxu0 0.0
    %1574 = vmatprep.subr.mxu0 0.0
    %1575 = vmatpush1.msra.mxu0 0.0
    %1576 = vmatprep.subr.mxu0 0.0
    %1577 = vmatpush1.msra.mxu0 0.0
    %1578 = vmatprep.subr.mxu0 0.0
    %1579 = vmatpush1.msra.mxu0 0.0
    %1580 = vmatprep.subr.mxu0 0.0
    %1581 = vmatpush1.msra.mxu0 0.0
    %1582 = vmatprep.subr.mxu0 0.0
    %1583 = vmatpush1.msra.mxu0 0.0
    %1584 = vmatprep.subr.mxu0 0.0
    %1585 = vmatpush1.msra.mxu0 0.0
    %1586 = vmatprep.subr.mxu0 0.0
    %1587 = vmatpush1.msra.mxu0 0.0
    %1588 = vmatprep.subr.mxu0 0.0
    %1589 = vmatpush1.msra.mxu0 0.0
    %1590 = vmatprep.subr.mxu0 0.0
    %1591 = vmatpush1.msra.mxu0 0.0
    %1592 = vmatprep.subr.mxu0 0.0
    %1593 = vmatpush1.msra.mxu0 0.0
    %1594 = vmatprep.subr.mxu0 0.0
    %1595 = vmatpush1.msra.mxu0 0.0
    %1596 = vmatprep.subr.mxu0 0.0
    %1597 = vmatpush1.msra.mxu0 0.0
    %1598 = vmatprep.subr.mxu0 0.0
    %1599 = vmatpush1.msra.mxu0 0.0
    %1600 = vmatprep.subr.mxu0 0.0
    %1601 = vmatpush1.msra.mxu0 0.0
    %1602 = vmatprep.subr.mxu0 0.0
    %1603 = vmatpush1.msra.mxu0 0.0
    %1604 = vmatprep.subr.mxu0 0.0
    %1605 = vmatpush1.msra.mxu0 0.0
    %1606 = vmatprep.subr.mxu0 0.0
    %1607 = vmatpush1.msra.mxu0 0.0
    %1608 = vmatprep.subr.mxu0 0.0
    %1609 = vmatpush1.msra.mxu0 0.0
    %1610 = vmatprep.subr.mxu0 0.0
    %1611 = vmatpush1.msra.mxu0 0.0
    %1612 = vmatprep.subr.mxu0 0.0
    %1613 = vmatpush1.msra.mxu0 0.0
    %1614 = vmatprep.subr.mxu0 0.0
    %1615 = vmatpush1.msra.mxu0 0.0
    %1616 = vmatprep.subr.mxu0 0.0
    %1617 = vmatpush1.msra.mxu0 0.0
    %1618 = vmatprep.subr.mxu0 0.0
    %1619 = vmatpush1.msra.mxu0 0.0
    %1620 = vmatprep.mubr.f32.mxu0 0.0
    %1621 = vmatmul.mubr.f32.gmra.mrb[0].mxu0 %v1554
    %v1622 = vpop.f32.mrb[0].mxu0
    %v1623 = vadd.f32 0.0, %v1622
    %v1624 = vpop.f32.mrb[0].mxu0
    %1625 = vdwg.mxu0
    %v1626 = vlaneseq
    %v1627 = vshrl.u32 %v1626, 7
    %v1628 = vsub.s32 0, %v1627
    %v1629 = vrot.slane %v1623, %v1628
    %v1630 = vsub.f32 %v1535, %v1629
    %v1631 = vsub.f32 %v1536, %v1629
    %v1632 = vsub.f32 %v1537, %v1629
    %v1633 = vsub.f32 %v1538, %v1629
    %v1634 = vmul.f32 %v1630, %v1630
    %v1635 = vmul.f32 %v1631, %v1631
    %v1636 = vmul.f32 %v1632, %v1632
    %v1637 = vmul.f32 %v1633, %v1633
    %v1638 = vsel %vm65, %v1634, 0.0
    %v1639 = vsel %vm65, %v1635, 0.0
    %v1640 = vadd.f32 %v1638, %v1639
    %v1641 = vsel %vm65, %v1636, 0.0
    %v1642 = vadd.f32 %v1640, %v1641
    %v1643 = vsel %vm65, %v1637, 0.0
    %v1644 = vadd.f32 %v1642, %v1643
    %v1645 = vrot.slane %v1644, 4
    %v1646 = vadd.f32 %v1644, %v1645
    %v1647 = vrot.slane %v1646, 2
    %v1648 = vadd.f32 %v1646, %v1647
    %v1649 = vrot.slane %v1648, 1
    %v1650 = vadd.f32 %v1648, %v1649
    %v1651 = vmul.f32 %v1650, 0.03125
    %v1653 = vsel %vm65, %v1651, 0
    %1655 = vmatprep.subr.mxu0 0.0
    %1656 = vmatpush1.msra.mxu0 %v80
    %1657 = vmatprep.subr.mxu0 0.0
    %1658 = vmatpush1.msra.mxu0 %v81
    %1659 = vmatprep.subr.mxu0 0.0
    %1660 = vmatpush1.msra.mxu0 %v82
    %1661 = vmatprep.subr.mxu0 0.0
    %1662 = vmatpush1.msra.mxu0 %v83
    %1663 = vmatprep.subr.mxu0 0.0
    %1664 = vmatpush1.msra.mxu0 %v84
    %1665 = vmatprep.subr.mxu0 0.0
    %1666 = vmatpush1.msra.mxu0 %v85
    %1667 = vmatprep.subr.mxu0 0.0
    %1668 = vmatpush1.msra.mxu0 %v86
    %1669 = vmatprep.subr.mxu0 0.0
    %1670 = vmatpush1.msra.mxu0 %v87
    %1671 = vmatprep.subr.mxu0 0.0
    %1672 = vmatpush1.msra.mxu0 0.0
    %1673 = vmatprep.subr.mxu0 0.0
    %1674 = vmatpush1.msra.mxu0 0.0
    %1675 = vmatprep.subr.mxu0 0.0
    %1676 = vmatpush1.msra.mxu0 0.0
    %1677 = vmatprep.subr.mxu0 0.0
    %1678 = vmatpush1.msra.mxu0 0.0
    %1679 = vmatprep.subr.mxu0 0.0
    %1680 = vmatpush1.msra.mxu0 0.0
    %1681 = vmatprep.subr.mxu0 0.0
    %1682 = vmatpush1.msra.mxu0 0.0
    %1683 = vmatprep.subr.mxu0 0.0
    %1684 = vmatpush1.msra.mxu0 0.0
    %1685 = vmatprep.subr.mxu0 0.0
    %1686 = vmatpush1.msra.mxu0 0.0
    %1687 = vmatprep.subr.mxu0 0.0
    %1688 = vmatpush1.msra.mxu0 0.0
    %1689 = vmatprep.subr.mxu0 0.0
    %1690 = vmatpush1.msra.mxu0 0.0
    %1691 = vmatprep.subr.mxu0 0.0
    %1692 = vmatpush1.msra.mxu0 0.0
    %1693 = vmatprep.subr.mxu0 0.0
    %1694 = vmatpush1.msra.mxu0 0.0
    %1695 = vmatprep.subr.mxu0 0.0
    %1696 = vmatpush1.msra.mxu0 0.0
    %1697 = vmatprep.subr.mxu0 0.0
    %1698 = vmatpush1.msra.mxu0 0.0
    %1699 = vmatprep.subr.mxu0 0.0
    %1700 = vmatpush1.msra.mxu0 0.0
    %1701 = vmatprep.subr.mxu0 0.0
    %1702 = vmatpush1.msra.mxu0 0.0
    %1703 = vmatprep.subr.mxu0 0.0
    %1704 = vmatpush1.msra.mxu0 0.0
    %1705 = vmatprep.subr.mxu0 0.0
    %1706 = vmatpush1.msra.mxu0 0.0
    %1707 = vmatprep.subr.mxu0 0.0
    %1708 = vmatpush1.msra.mxu0 0.0
    %1709 = vmatprep.subr.mxu0 0.0
    %1710 = vmatpush1.msra.mxu0 0.0
    %1711 = vmatprep.subr.mxu0 0.0
    %1712 = vmatpush1.msra.mxu0 0.0
    %1713 = vmatprep.subr.mxu0 0.0
    %1714 = vmatpush1.msra.mxu0 0.0
    %1715 = vmatprep.subr.mxu0 0.0
    %1716 = vmatpush1.msra.mxu0 0.0
    %1717 = vmatprep.subr.mxu0 0.0
    %1718 = vmatpush1.msra.mxu0 0.0
    %1719 = vmatprep.mubr.f32.mxu0 0.0
    %1720 = vmatmul.mubr.f32.gmra.mrb[0].mxu0 %v1653
    %v1721 = vpop.f32.mrb[0].mxu0
    %v1722 = vadd.f32 1e-05, %v1721
    %v1723 = vpop.f32.mrb[0].mxu0
    %1724 = vdwg.mxu0
    %v1725 = vrsqrt.pop %v1722
    %v1726 = vmul.f32 %v78, %v1725
    %v1728 = vlaneseq
    %v1729 = vshrl.u32 %v1728, 7
    %v1730 = vsub.s32 0, %v1729
    %v1731 = vrot.slane %v1726, %v1730
    %v1733 = vmul.f32 %v1630, %v1731
    %v1734 = vmul.f32 %v1631, %v1731
    %v1735 = vmul.f32 %v1632, %v1731
    %v1736 = vmul.f32 %v1633, %v1731
    %v1737 = vadd.f32 %v1733, %v637
    %v1738 = vadd.f32 %v1734, %v637
    %v1739 = vadd.f32 %v1735, %v637
    %v1740 = vadd.f32 %v1736, %v637
    %v1741 = vmax.f32 %v1737, 0.0
    %v1742 = vmax.f32 %v1738, 0.0
    %v1743 = vmax.f32 %v1739, 0.0
    %v1744 = vmax.f32 %v1740, 0.0
    %1745 = vst.msk [vmem:[#allocation9] sm:$0xff] %vm65, %v1741
    %1746 = vst.msk [vmem:[#allocation9 + $0x8] sm:$0xff] %vm65, %v1742
    %1747 = vst.msk [vmem:[#allocation9 + $0x10] sm:$0xff] %vm65, %v1743
    %1748 = vst.msk [vmem:[#allocation9 + $0x18] sm:$0xff] %vm65, %v1744
    // Predicated region
    $region38: #{tpu_custom_call.1} parent=1 // pred_check
      _
    $region39: #{tpu_custom_call.1} parent=1 // pred_check_branch
      %1750 = sbr.rel (0) target = $region41
    $region40: #{tpu_custom_call.1} parent=1 // pred_region
      %s1752 = ssub.s32 512, 512
      %1753 = vsyncadd [#allocation5], %s1752
      %s1754 = sshll.u32 [#allocation9], 4
      %s1755 = int_to_ptr.vmem [resolvable:$true] %s1754
      %1760 = dma.vmem_to_hbm [thread:$0]  %s1755, 512, %s6, [#allocation5], 128, 128, 8
    $region41: #{tpu_custom_call.1} parent=1 // pred_fallthru
      _
    // Predicated region
    $region42: #{tpu_custom_call.1} parent=1 // pred_check
      _
    $region43: #{tpu_custom_call.1} parent=1 // pred_check_branch
      %1762 = sbr.rel (0) target = $region45
    $region44: #{tpu_custom_call.1} parent=1 // pred_region
      %1763 = dma.done [#allocation5], 512
    $region45: #{tpu_custom_call.1} parent=1 // pred_fallthru
      _
    %1764 = vsyncpa [#allocation4], 1
    %1765 = vsyncpa [#allocation7], 1
    %1766 = vsyncpa [#allocation5], 1

</llo_original>
